<compile_context>
chip_gen: v5e
topology: v5e:2x2
jax: 0.10.0
libtpu: 0.0.40
codegen_flags: <defaults>
</compile_context>

<pallas_src>
import jax
import jax.numpy as jnp
from jax import lax
from jax.experimental import pallas as pl
from jax.experimental.pallas import tpu as pltpu

EPS = 1e-5  # nn.BatchNorm2d default eps


def _round_up(v, m):
    return (v + m - 1) // m * m


def convolution_layer_forward(x_nchw, weight, bias, gamma, beta,
                              kernel_size=3, padding=1):
    """x_nchw: (N, C_in, H, W); weight: (C_out, C_in, KH, KW) (PyTorch layout).

    `bias` is accepted to mirror the module but is intentionally not used by
    the kernel: training-mode BatchNorm cancels it exactly.
    """
    N, C_in, H, W = x_nchw.shape
    C_out, C_in_w, KH, KW = weight.shape
    assert C_in_w == C_in and KH == kernel_size and KW == kernel_size

    H_pad, W_pad = H + 2 * padding, W + 2 * padding
    H_out, W_out = H_pad - (KH - 1), W_pad - (KW - 1)     # stride=1, dilation=1

    # Lane-dense flat sizes (multiples of 128 -> unmasked stores).
    P_out = _round_up(H_out * W_pad, 128)                 # computed cols / image
    halo = (KH - 1) * W_pad + (KW - 1)                    # largest tap shift
    P_in = _round_up(P_out + halo, 128)                   # input cols / image

    # ---- glue: pad + flatten each image (no im2col materialized in HBM) ----
    xpad = jnp.pad(x_nchw.astype(jnp.float32),
                   ((0, 0), (0, 0), (padding, padding), (padding, padding)))
    x_flat = xpad.reshape(N, C_in, H_pad * W_pad)
    x_flat = jnp.pad(x_flat, ((0, 0), (0, 0), (0, P_in - H_pad * W_pad)))

    # Per-tap weights: (KH*KW, C_out, C_in); tap t = (kh, kw) row-major.
    w_taps = jnp.transpose(weight.astype(jnp.float32), (2, 3, 0, 1)
                           ).reshape(KH * KW, C_out, C_in)

    # Validity mask over the P_out computed columns of one image
    # (column p maps to (h, w) = (p // W_pad, p % W_pad); valid iff h < H_out
    # and w < W_out — padding / overhang columns are excluded from BN stats).
    cols = jnp.arange(P_out)
    valid = (cols < H_out * W_pad) & ((cols % W_pad) < W_out)
    mask = valid.astype(jnp.float32)[None, :]             # (1, P_out)

    g_col = gamma.reshape(C_out, 1).astype(jnp.float32)
    b_col = beta.reshape(C_out, 1).astype(jnp.float32)

    inv_count = 1.0 / float(N * H_out * W_out)            # valid pixels (static)
    taps = [(t, (t // KW) * W_pad + (t % KW)) for t in range(KH * KW)]

    def kernel(x_ref, w_ref, m_ref, g_ref, b_ref, o_ref, sum_ref, ssq_ref):
        phase = pl.program_id(0)   # 0: accumulate BN stats, 1: normalize+ReLU
        img = pl.program_id(1)

        @pl.when(jnp.logical_and(phase == 0, img == 0))
        def _init():
            sum_ref[...] = jnp.zeros_like(sum_ref)
            ssq_ref[...] = jnp.zeros_like(ssq_ref)

        # Conv as KH*KW accumulated (C_out, C_in) @ (C_in, P_out) matmuls over
        # statically shifted views of the flattened padded image.  The MXU
        # output (lane) dimension is the large P_out; all shifts are < 128.
        y = None
        for t, shift in taps:
            x_tap = x_ref[0, :, shift:shift + P_out]      # (C_in, P_out)
            part = jnp.dot(w_ref[t], x_tap,
                           preferred_element_type=jnp.float32)
            y = part if y is None else y + part           # (C_out, P_out) f32

        m = m_ref[...]                                    # (1, P_out)

        @pl.when(phase == 0)
        def _stats():
            ym = y * m
            sum_ref[...] += jnp.sum(ym, axis=1, keepdims=True)
            ssq_ref[...] += jnp.sum(ym * y, axis=1, keepdims=True)

        @pl.when(phase == 1)
        def _normalize():
            mean = sum_ref[...] * inv_count                       # (C_out, 1)
            var = ssq_ref[...] * inv_count - mean * mean          # biased (train)
            scale = lax.rsqrt(var + EPS) * g_ref[...]
            offs = b_ref[...] - mean * scale
            o_ref[0] = jnp.maximum(y * scale + offs, 0.0)         # ReLU

    out_flat = pl.pallas_call(
        kernel,
        out_shape=jax.ShapeDtypeStruct((N, C_out, P_out), jnp.float32),
        grid=(2, N),
        in_specs=[
            pl.BlockSpec((1, C_in, P_in), lambda p, n: (n, 0, 0)),        # image
            pl.BlockSpec((KH * KW, C_out, C_in), lambda p, n: (0, 0, 0)), # taps
            pl.BlockSpec((1, P_out), lambda p, n: (0, 0)),                # mask
            pl.BlockSpec((C_out, 1), lambda p, n: (0, 0)),                # gamma
            pl.BlockSpec((C_out, 1), lambda p, n: (0, 0)),                # beta
        ],
        out_specs=pl.BlockSpec((1, C_out, P_out), lambda p, n: (n, 0, 0)),
        scratch_shapes=[
            pltpu.VMEM((C_out, 1), jnp.float32),   # per-channel sum
            pltpu.VMEM((C_out, 1), jnp.float32),   # per-channel sum of squares
        ],
        compiler_params=pltpu.CompilerParams(
            # Both axes sequential: phase 1 consumes phase-0 stats and all
            # steps share the scratch accumulators.
            dimension_semantics=("arbitrary", "arbitrary"),
            vmem_limit_bytes=32 * 1024 * 1024,
        ),
    )(x_flat, w_taps, mask, g_col, b_col)

    # ---- glue: (N, C_out, P_out) -> NCHW (drop padding / overhang columns) ----
    out = out_flat[:, :, :H_out * W_pad].reshape(N, C_out, H_out, W_pad)
    return out[:, :, :, :W_out]


def reference_forward(x_nchw, weight, bias, gamma, beta, padding=1):
    """Pure-JAX reference of conv(+bias) -> batch_norm(train) -> relu in NCHW."""
    f = lax.conv_general_dilated(
        x_nchw.astype(jnp.float32), weight.astype(jnp.float32),
        window_strides=(1, 1), padding=[(padding, padding), (padding, padding)],
        dimension_numbers=("NCHW", "OIHW", "NCHW"))
    f = f + bias.reshape(1, -1, 1, 1)
    mean = jnp.mean(f, axis=(0, 2, 3), keepdims=True)
    var = jnp.mean((f - mean) ** 2, axis=(0, 2, 3), keepdims=True)
    f = (f - mean) * lax.rsqrt(var + EPS)
    f = f * gamma.reshape(1, -1, 1, 1) + beta.reshape(1, -1, 1, 1)
    return jnp.maximum(f, 0.0)


if __name__ == "__main__":
    key = jax.random.PRNGKey(0)
    k_x, k_w, k_b = jax.random.split(key, 3)

    N, C_in, H, W = 2, 4, 16, 16
    C_out, KS = 8, 3

    x = jax.random.normal(k_x, (N, C_in, H, W), dtype=jnp.float32)
    # Deterministic parameter init (synthetic; not loading a checkpoint).
    fan_in = C_in * KS * KS
    weight = jax.random.uniform(k_w, (C_out, C_in, KS, KS), jnp.float32,
                                minval=-1.0, maxval=1.0) / jnp.sqrt(fan_in)
    bias = jax.random.uniform(k_b, (C_out,), jnp.float32,
                              minval=-0.1, maxval=0.1)
    gamma = jnp.ones((C_out,), jnp.float32)   # BatchNorm2d default weight init
    beta = jnp.zeros((C_out,), jnp.float32)   # BatchNorm2d default bias init

    out = convolution_layer_forward(x, weight, bias, gamma, beta,
                                    kernel_size=KS, padding=1)
    out = jax.block_until_ready(out)

    ref = reference_forward(x, weight, bias, gamma, beta, padding=1)
    assert out.shape == (N, C_out, H, W)
    assert jnp.allclose(out, ref, atol=1e-4, rtol=1e-4)

    print("KERNEL_OK")
</pallas_src>

<mosaic_0001>
module attributes {stable_mosaic.version = 11 : i64} {
  func.func @kernel(%arg0: i32, %arg1: i32, %arg2: memref<1x4x512xf32, #tpu.memory_space<vmem>>, %arg3: memref<9x8x4xf32, #tpu.memory_space<vmem>>, %arg4: memref<1x384xf32, #tpu.memory_space<vmem>>, %arg5: memref<8x1xf32, #tpu.memory_space<vmem>>, %arg6: memref<8x1xf32, #tpu.memory_space<vmem>>, %arg7: memref<1x8x384xf32, #tpu.memory_space<vmem>>, %arg8: memref<8x1xf32, #tpu.memory_space<vmem>>, %arg9: memref<8x1xf32, #tpu.memory_space<vmem>>) attributes {dimension_semantics = [#tpu.dimension_semantics<arbitrary>, #tpu.dimension_semantics<arbitrary>], iteration_bounds = array<i64: 2, 2>, scalar_prefetch = 0 : i64, scratch_operands = 2 : i64, tpu.core_type = #tpu.core_type<tc>, window_params = [{transform_indices = @transform_0, window_bounds = array<i64: 1, 4, 512>}, {pipeline_mode = #tpu.pipeline_mode<synchronous>, transform_indices = @transform_1, window_bounds = array<i64: 9, 8, 4>}, {pipeline_mode = #tpu.pipeline_mode<synchronous>, transform_indices = @transform_2, window_bounds = array<i64: 1, 384>}, {pipeline_mode = #tpu.pipeline_mode<synchronous>, transform_indices = @transform_3, window_bounds = array<i64: 8, 1>}, {pipeline_mode = #tpu.pipeline_mode<synchronous>, transform_indices = @transform_4, window_bounds = array<i64: 8, 1>}, {transform_indices = @transform_5, window_bounds = array<i64: 1, 8, 384>}]} {
    %c0_i32 = arith.constant 0 : i32
    %0 = arith.cmpi eq, %arg0, %c0_i32 : i32
    %c0_i32_0 = arith.constant 0 : i32
    %1 = arith.cmpi eq, %arg1, %c0_i32_0 : i32
    %2 = arith.andi %0, %1 : i1
    %3 = arith.extui %2 : i1 to i32
    %c0_i32_1 = arith.constant 0 : i32
    %4 = arith.cmpi ne, %3, %c0_i32_1 : i32
    scf.if %4 {
      %cst_54 = arith.constant 0.000000e+00 : f32
      %65 = vector.broadcast %cst_54 : f32 to vector<8x1xf32>
      %c0_55 = arith.constant 0 : index
      %c0_56 = arith.constant 0 : index
      %66 = vector.load %arg8[%c0_55, %c0_56] : memref<8x1xf32, #tpu.memory_space<vmem>>, vector<8x1xf32>
      tpu.vector_store %arg8[%c0_55, %c0_56], %65 {strides = array<i32>} : memref<8x1xf32, #tpu.memory_space<vmem>>, vector<8x1xf32>,
      %cst_57 = arith.constant 0.000000e+00 : f32
      %67 = vector.broadcast %cst_57 : f32 to vector<8x1xf32>
      %c0_58 = arith.constant 0 : index
      %c0_59 = arith.constant 0 : index
      %68 = vector.load %arg9[%c0_58, %c0_59] : memref<8x1xf32, #tpu.memory_space<vmem>>, vector<8x1xf32>
      tpu.vector_store %arg9[%c0_58, %c0_59], %67 {strides = array<i32>} : memref<8x1xf32, #tpu.memory_space<vmem>>, vector<8x1xf32>,
    } else {
    }
    %c0 = arith.constant 0 : index
    %c0_2 = arith.constant 0 : index
    %c0_3 = arith.constant 0 : index
    %5 = vector.load %arg2[%c0, %c0_2, %c0_3] : memref<1x4x512xf32, #tpu.memory_space<vmem>>, vector<1x4x384xf32>
    %6 = vector.shape_cast %5 : vector<1x4x384xf32> to vector<4x384xf32>
    %c0_4 = arith.constant 0 : index
    %c0_5 = arith.constant 0 : index
    %c0_6 = arith.constant 0 : index
    %7 = vector.load %arg3[%c0_4, %c0_5, %c0_6] : memref<9x8x4xf32, #tpu.memory_space<vmem>>, vector<1x8x4xf32>
    %8 = vector.shape_cast %7 : vector<1x8x4xf32> to vector<8x4xf32>
    %cst = arith.constant dense<0.000000e+00> : vector<8x384xf32>
    %9 = tpu.matmul %8, %6, %cst {dimension_numbers = #tpu.dot_dimension_numbers<[1], [0], [0], [1], [0, 0, 1, 1], [], []>} : vector<8x4xf32>, vector<4x384xf32>, vector<8x384xf32> -> vector<8x384xf32>
    %c0_7 = arith.constant 0 : index
    %c0_8 = arith.constant 0 : index
    %c1 = arith.constant 1 : index
    %10 = vector.load %arg2[%c0_7, %c0_8, %c1] : memref<1x4x512xf32, #tpu.memory_space<vmem>>, vector<1x4x384xf32>
    %11 = vector.shape_cast %10 : vector<1x4x384xf32> to vector<4x384xf32>
    %c1_9 = arith.constant 1 : index
    %c0_10 = arith.constant 0 : index
    %c0_11 = arith.constant 0 : index
    %12 = vector.load %arg3[%c1_9, %c0_10, %c0_11] : memref<9x8x4xf32, #tpu.memory_space<vmem>>, vector<1x8x4xf32>
    %13 = vector.shape_cast %12 : vector<1x8x4xf32> to vector<8x4xf32>
    %cst_12 = arith.constant dense<0.000000e+00> : vector<8x384xf32>
    %14 = tpu.matmul %13, %11, %cst_12 {dimension_numbers = #tpu.dot_dimension_numbers<[1], [0], [0], [1], [0, 0, 1, 1], [], []>} : vector<8x4xf32>, vector<4x384xf32>, vector<8x384xf32> -> vector<8x384xf32>
    %15 = arith.addf %9, %14 : vector<8x384xf32>
    %c0_13 = arith.constant 0 : index
    %c0_14 = arith.constant 0 : index
    %c2 = arith.constant 2 : index
    %16 = vector.load %arg2[%c0_13, %c0_14, %c2] : memref<1x4x512xf32, #tpu.memory_space<vmem>>, vector<1x4x384xf32>
    %17 = vector.shape_cast %16 : vector<1x4x384xf32> to vector<4x384xf32>
    %c2_15 = arith.constant 2 : index
    %c0_16 = arith.constant 0 : index
    %c0_17 = arith.constant 0 : index
    %18 = vector.load %arg3[%c2_15, %c0_16, %c0_17] : memref<9x8x4xf32, #tpu.memory_space<vmem>>, vector<1x8x4xf32>
    %19 = vector.shape_cast %18 : vector<1x8x4xf32> to vector<8x4xf32>
    %cst_18 = arith.constant dense<0.000000e+00> : vector<8x384xf32>
    %20 = tpu.matmul %19, %17, %cst_18 {dimension_numbers = #tpu.dot_dimension_numbers<[1], [0], [0], [1], [0, 0, 1, 1], [], []>} : vector<8x4xf32>, vector<4x384xf32>, vector<8x384xf32> -> vector<8x384xf32>
    %21 = arith.addf %15, %20 : vector<8x384xf32>
    %c0_19 = arith.constant 0 : index
    %c0_20 = arith.constant 0 : index
    %c18 = arith.constant 18 : index
    %22 = vector.load %arg2[%c0_19, %c0_20, %c18] : memref<1x4x512xf32, #tpu.memory_space<vmem>>, vector<1x4x384xf32>
    %23 = vector.shape_cast %22 : vector<1x4x384xf32> to vector<4x384xf32>
    %c3 = arith.constant 3 : index
    %c0_21 = arith.constant 0 : index
    %c0_22 = arith.constant 0 : index
    %24 = vector.load %arg3[%c3, %c0_21, %c0_22] : memref<9x8x4xf32, #tpu.memory_space<vmem>>, vector<1x8x4xf32>
    %25 = vector.shape_cast %24 : vector<1x8x4xf32> to vector<8x4xf32>
    %cst_23 = arith.constant dense<0.000000e+00> : vector<8x384xf32>
    %26 = tpu.matmul %25, %23, %cst_23 {dimension_numbers = #tpu.dot_dimension_numbers<[1], [0], [0], [1], [0, 0, 1, 1], [], []>} : vector<8x4xf32>, vector<4x384xf32>, vector<8x384xf32> -> vector<8x384xf32>
    %27 = arith.addf %21, %26 : vector<8x384xf32>
    %c0_24 = arith.constant 0 : index
    %c0_25 = arith.constant 0 : index
    %c19 = arith.constant 19 : index
    %28 = vector.load %arg2[%c0_24, %c0_25, %c19] : memref<1x4x512xf32, #tpu.memory_space<vmem>>, vector<1x4x384xf32>
    %29 = vector.shape_cast %28 : vector<1x4x384xf32> to vector<4x384xf32>
    %c4 = arith.constant 4 : index
    %c0_26 = arith.constant 0 : index
    %c0_27 = arith.constant 0 : index
    %30 = vector.load %arg3[%c4, %c0_26, %c0_27] : memref<9x8x4xf32, #tpu.memory_space<vmem>>, vector<1x8x4xf32>
    %31 = vector.shape_cast %30 : vector<1x8x4xf32> to vector<8x4xf32>
    %cst_28 = arith.constant dense<0.000000e+00> : vector<8x384xf32>
    %32 = tpu.matmul %31, %29, %cst_28 {dimension_numbers = #tpu.dot_dimension_numbers<[1], [0], [0], [1], [0, 0, 1, 1], [], []>} : vector<8x4xf32>, vector<4x384xf32>, vector<8x384xf32> -> vector<8x384xf32>
    %33 = arith.addf %27, %32 : vector<8x384xf32>
    %c0_29 = arith.constant 0 : index
    %c0_30 = arith.constant 0 : index
    %c20 = arith.constant 20 : index
    %34 = vector.load %arg2[%c0_29, %c0_30, %c20] : memref<1x4x512xf32, #tpu.memory_space<vmem>>, vector<1x4x384xf32>
    %35 = vector.shape_cast %34 : vector<1x4x384xf32> to vector<4x384xf32>
    %c5 = arith.constant 5 : index
    %c0_31 = arith.constant 0 : index
    %c0_32 = arith.constant 0 : index
    %36 = vector.load %arg3[%c5, %c0_31, %c0_32] : memref<9x8x4xf32, #tpu.memory_space<vmem>>, vector<1x8x4xf32>
    %37 = vector.shape_cast %36 : vector<1x8x4xf32> to vector<8x4xf32>
    %cst_33 = arith.constant dense<0.000000e+00> : vector<8x384xf32>
    %38 = tpu.matmul %37, %35, %cst_33 {dimension_numbers = #tpu.dot_dimension_numbers<[1], [0], [0], [1], [0, 0, 1, 1], [], []>} : vector<8x4xf32>, vector<4x384xf32>, vector<8x384xf32> -> vector<8x384xf32>
    %39 = arith.addf %33, %38 : vector<8x384xf32>
    %c0_34 = arith.constant 0 : index
    %c0_35 = arith.constant 0 : index
    %c36 = arith.constant 36 : index
    %40 = vector.load %arg2[%c0_34, %c0_35, %c36] : memref<1x4x512xf32, #tpu.memory_space<vmem>>, vector<1x4x384xf32>
    %41 = vector.shape_cast %40 : vector<1x4x384xf32> to vector<4x384xf32>
    %c6 = arith.constant 6 : index
    %c0_36 = arith.constant 0 : index
    %c0_37 = arith.constant 0 : index
    %42 = vector.load %arg3[%c6, %c0_36, %c0_37] : memref<9x8x4xf32, #tpu.memory_space<vmem>>, vector<1x8x4xf32>
    %43 = vector.shape_cast %42 : vector<1x8x4xf32> to vector<8x4xf32>
    %cst_38 = arith.constant dense<0.000000e+00> : vector<8x384xf32>
    %44 = tpu.matmul %43, %41, %cst_38 {dimension_numbers = #tpu.dot_dimension_numbers<[1], [0], [0], [1], [0, 0, 1, 1], [], []>} : vector<8x4xf32>, vector<4x384xf32>, vector<8x384xf32> -> vector<8x384xf32>
    %45 = arith.addf %39, %44 : vector<8x384xf32>
    %c0_39 = arith.constant 0 : index
    %c0_40 = arith.constant 0 : index
    %c37 = arith.constant 37 : index
    %46 = vector.load %arg2[%c0_39, %c0_40, %c37] : memref<1x4x512xf32, #tpu.memory_space<vmem>>, vector<1x4x384xf32>
    %47 = vector.shape_cast %46 : vector<1x4x384xf32> to vector<4x384xf32>
    %c7 = arith.constant 7 : index
    %c0_41 = arith.constant 0 : index
    %c0_42 = arith.constant 0 : index
    %48 = vector.load %arg3[%c7, %c0_41, %c0_42] : memref<9x8x4xf32, #tpu.memory_space<vmem>>, vector<1x8x4xf32>
    %49 = vector.shape_cast %48 : vector<1x8x4xf32> to vector<8x4xf32>
    %cst_43 = arith.constant dense<0.000000e+00> : vector<8x384xf32>
    %50 = tpu.matmul %49, %47, %cst_43 {dimension_numbers = #tpu.dot_dimension_numbers<[1], [0], [0], [1], [0, 0, 1, 1], [], []>} : vector<8x4xf32>, vector<4x384xf32>, vector<8x384xf32> -> vector<8x384xf32>
    %51 = arith.addf %45, %50 : vector<8x384xf32>
    %c0_44 = arith.constant 0 : index
    %c0_45 = arith.constant 0 : index
    %c38 = arith.constant 38 : index
    %52 = vector.load %arg2[%c0_44, %c0_45, %c38] : memref<1x4x512xf32, #tpu.memory_space<vmem>>, vector<1x4x384xf32>
    %53 = vector.shape_cast %52 : vector<1x4x384xf32> to vector<4x384xf32>
    %c8 = arith.constant 8 : index
    %c0_46 = arith.constant 0 : index
    %c0_47 = arith.constant 0 : index
    %54 = vector.load %arg3[%c8, %c0_46, %c0_47] : memref<9x8x4xf32, #tpu.memory_space<vmem>>, vector<1x8x4xf32>
    %55 = vector.shape_cast %54 : vector<1x8x4xf32> to vector<8x4xf32>
    %cst_48 = arith.constant dense<0.000000e+00> : vector<8x384xf32>
    %56 = tpu.matmul %55, %53, %cst_48 {dimension_numbers = #tpu.dot_dimension_numbers<[1], [0], [0], [1], [0, 0, 1, 1], [], []>} : vector<8x4xf32>, vector<4x384xf32>, vector<8x384xf32> -> vector<8x384xf32>
    %57 = arith.addf %51, %56 : vector<8x384xf32>
    %c0_49 = arith.constant 0 : index
    %c0_50 = arith.constant 0 : index
    %58 = vector.load %arg4[%c0_49, %c0_50] : memref<1x384xf32, #tpu.memory_space<vmem>>, vector<1x384xf32>
    %c0_i32_51 = arith.constant 0 : i32
    %59 = arith.cmpi eq, %arg0, %c0_i32_51 : i32
    %60 = arith.extui %59 : i1 to i32
    %c0_i32_52 = arith.constant 0 : i32
    %61 = arith.cmpi ne, %60, %c0_i32_52 : i32
    scf.if %61 {
      %65 = vector.broadcast %58 : vector<1x384xf32> to vector<8x384xf32>
      %66 = arith.mulf %57, %65 : vector<8x384xf32>
      %c0_54 = arith.constant 0 : index
      %c0_55 = arith.constant 0 : index
      %67 = vector.load %arg8[%c0_54, %c0_55] : memref<8x1xf32, #tpu.memory_space<vmem>>, vector<8x1xf32>
      %cst_56 = arith.constant dense<0.000000e+00> : vector<8xf32>
      %68 = vector.multi_reduction <add>, %66, %cst_56 [1] : vector<8x384xf32> to vector<8xf32>
      %69 = vector.shape_cast %68 : vector<8xf32> to vector<8x1xf32>
      %70 = arith.addf %67, %69 : vector<8x1xf32>
      %c0_57 = arith.constant 0 : index
      %c0_58 = arith.constant 0 : index
      %71 = vector.load %arg8[%c0_57, %c0_58] : memref<8x1xf32, #tpu.memory_space<vmem>>, vector<8x1xf32>
      tpu.vector_store %arg8[%c0_57, %c0_58], %70 {strides = array<i32>} : memref<8x1xf32, #tpu.memory_space<vmem>>, vector<8x1xf32>,
      %c0_59 = arith.constant 0 : index
      %c0_60 = arith.constant 0 : index
      %72 = vector.load %arg9[%c0_59, %c0_60] : memref<8x1xf32, #tpu.memory_space<vmem>>, vector<8x1xf32>
      %73 = arith.mulf %66, %57 : vector<8x384xf32>
      %cst_61 = arith.constant dense<0.000000e+00> : vector<8xf32>
      %74 = vector.multi_reduction <add>, %73, %cst_61 [1] : vector<8x384xf32> to vector<8xf32>
      %75 = vector.shape_cast %74 : vector<8xf32> to vector<8x1xf32>
      %76 = arith.addf %72, %75 : vector<8x1xf32>
      %c0_62 = arith.constant 0 : index
      %c0_63 = arith.constant 0 : index
      %77 = vector.load %arg9[%c0_62, %c0_63] : memref<8x1xf32, #tpu.memory_space<vmem>>, vector<8x1xf32>
      tpu.vector_store %arg9[%c0_62, %c0_63], %76 {strides = array<i32>} : memref<8x1xf32, #tpu.memory_space<vmem>>, vector<8x1xf32>,
    } else {
    }
    %c1_i32 = arith.constant 1 : i32
    %62 = arith.cmpi eq, %arg0, %c1_i32 : i32
    %63 = arith.extui %62 : i1 to i32
    %c0_i32_53 = arith.constant 0 : i32
    %64 = arith.cmpi ne, %63, %c0_i32_53 : i32
    scf.if %64 {
      %c0_54 = arith.constant 0 : index
      %c0_55 = arith.constant 0 : index
      %65 = vector.load %arg8[%c0_54, %c0_55] : memref<8x1xf32, #tpu.memory_space<vmem>>, vector<8x1xf32>
      %cst_56 = arith.constant 0.001953125 : f32
      %66 = vector.broadcast %cst_56 : f32 to vector<8x1xf32>
      %67 = arith.mulf %65, %66 : vector<8x1xf32>
      %c0_57 = arith.constant 0 : index
      %c0_58 = arith.constant 0 : index
      %68 = vector.load %arg9[%c0_57, %c0_58] : memref<8x1xf32, #tpu.memory_space<vmem>>, vector<8x1xf32>
      %cst_59 = arith.constant 0.001953125 : f32
      %69 = vector.broadcast %cst_59 : f32 to vector<8x1xf32>
      %70 = arith.mulf %68, %69 : vector<8x1xf32>
      %71 = arith.mulf %67, %67 : vector<8x1xf32>
      %72 = arith.subf %70, %71 : vector<8x1xf32>
      %cst_60 = arith.constant 9.99999974E-6 : f32
      %73 = vector.broadcast %cst_60 : f32 to vector<8x1xf32>
      %74 = arith.addf %72, %73 : vector<8x1xf32>
      %75 = math.rsqrt %74 : vector<8x1xf32>
      %c0_61 = arith.constant 0 : index
      %c0_62 = arith.constant 0 : index
      %76 = vector.load %arg5[%c0_61, %c0_62] : memref<8x1xf32, #tpu.memory_space<vmem>>, vector<8x1xf32>
      %77 = arith.mulf %75, %76 : vector<8x1xf32>
      %c0_63 = arith.constant 0 : index
      %c0_64 = arith.constant 0 : index
      %78 = vector.load %arg6[%c0_63, %c0_64] : memref<8x1xf32, #tpu.memory_space<vmem>>, vector<8x1xf32>
      %79 = arith.mulf %67, %77 : vector<8x1xf32>
      %80 = arith.subf %78, %79 : vector<8x1xf32>
      %81 = vector.broadcast %77 : vector<8x1xf32> to vector<8x384xf32>
      %82 = arith.mulf %57, %81 : vector<8x384xf32>
      %83 = vector.broadcast %80 : vector<8x1xf32> to vector<8x384xf32>
      %84 = arith.addf %82, %83 : vector<8x384xf32>
      %cst_65 = arith.constant 0.000000e+00 : f32
      %85 = vector.broadcast %cst_65 : f32 to vector<8x384xf32>
      %86 = arith.maximumf %84, %85 : vector<8x384xf32>
      %c0_66 = arith.constant 0 : index
      %c0_67 = arith.constant 0 : index
      %c0_68 = arith.constant 0 : index
      %87 = vector.load %arg7[%c0_66, %c0_67, %c0_68] : memref<1x8x384xf32, #tpu.memory_space<vmem>>, vector<1x8x384xf32>
      %88 = vector.shape_cast %87 : vector<1x8x384xf32> to vector<8x384xf32>
      %89 = vector.shape_cast %86 : vector<8x384xf32> to vector<1x8x384xf32>
      tpu.vector_store %arg7[%c0_66, %c0_67, %c0_68], %89 {strides = array<i32>} : memref<1x8x384xf32, #tpu.memory_space<vmem>>, vector<1x8x384xf32>,
    } else {
    }
    return
  }
  func.func @transform_0(%arg0: i32, %arg1: i32) -> (i32, i32, i32) {
    %c0_i32 = arith.constant 0 : i32
    %c0_i32_0 = arith.constant 0 : i32
    %c0_i32_1 = arith.constant 0 : i32
    return %arg1, %c0_i32, %c0_i32_0 : i32, i32, i32
  }
  func.func @transform_1(%arg0: i32, %arg1: i32) -> (i32, i32, i32) {
    %c0_i32 = arith.constant 0 : i32
    %c0_i32_0 = arith.constant 0 : i32
    %c0_i32_1 = arith.constant 0 : i32
    %c0_i32_2 = arith.constant 0 : i32
    return %c0_i32, %c0_i32_0, %c0_i32_1 : i32, i32, i32
  }
  func.func @transform_2(%arg0: i32, %arg1: i32) -> (i32, i32) {
    %c0_i32 = arith.constant 0 : i32
    %c0_i32_0 = arith.constant 0 : i32
    %c0_i32_1 = arith.constant 0 : i32
    return %c0_i32, %c0_i32_0 : i32, i32
  }
  func.func @transform_3(%arg0: i32, %arg1: i32) -> (i32, i32) {
    %c0_i32 = arith.constant 0 : i32
    %c0_i32_0 = arith.constant 0 : i32
    %c0_i32_1 = arith.constant 0 : i32
    return %c0_i32, %c0_i32_0 : i32, i32
  }
  func.func @transform_4(%arg0: i32, %arg1: i32) -> (i32, i32) {
    %c0_i32 = arith.constant 0 : i32
    %c0_i32_0 = arith.constant 0 : i32
    %c0_i32_1 = arith.constant 0 : i32
    return %c0_i32, %c0_i32_0 : i32, i32
  }
  func.func @transform_5(%arg0: i32, %arg1: i32) -> (i32, i32, i32) {
    %c0_i32 = arith.constant 0 : i32
    %c0_i32_0 = arith.constant 0 : i32
    %c0_i32_1 = arith.constant 0 : i32
    return %arg1, %c0_i32, %c0_i32_0 : i32, i32, i32
  }
}

</mosaic_0001>

<llo_original>
// kernel: tpu_custom_call.1
$region0: #{tpu_custom_call.1}
  #allocation0 [shape = 'u32[]', space=smem, size = 0x4, offset = 0x4, fixed_abs, tag = 'smem constant byte address 0x4 - core index']
  #allocation1 [shape = 'u32[72,128]{1,0:T(1,128)}', space=vmem, size = 0x9000, scoped, tag = 'internal scratch']
  #allocation2 [shape = 'f32[8,1]{1,0:T(8,128)}', space=vmem, size = 0x1000, scoped, tag = 'scratch operand']
  #allocation3 [shape = 'f32[8,1]{1,0:T(8,128)}', space=vmem, size = 0x1000, scoped, tag = 'scratch operand']
  %s0 = inlined_call_operand.vmem [shape: f32[2,4,512], index: 0, kind: input, shape index: {}]
  %s1 = inlined_call_operand.vmem [shape: f32[9,8,4], index: 1, kind: input, shape index: {}]
  %s2 = inlined_call_operand.vmem [shape: f32[1,384], index: 2, kind: input, shape index: {}]
  %s3 = inlined_call_operand.vmem [shape: f32[8,1], index: 3, kind: input, shape index: {}]
  %s4 = inlined_call_operand.vmem [shape: f32[8,1], index: 4, kind: input, shape index: {}]
  %s5 = inlined_call_operand.hbm [shape: f32[2,8,384], index: 5, kind: output, shape index: {}]
  %s6 = sld [smem:[#allocation0]]
  $region65: #{tpu_custom_call.1} parent=0
    _
  %s8 = ssub.s32 1, %s6
  %s9 = scalar_select 0, %s8, %s6
  $region1: #{tpu_custom_call.1} parent=0
    #allocation4 [shape = 'u8[24576]{0}', space=vmem, size = 0x6000, scoped, tag = 'output window, operand 0']
    #allocation5 [shape = 's32[2]{0}', space=sflag, size = 0x8, scoped, tag = 'scoped memory for tpu_custom_call.1']
    %10 = vsyncpa [#allocation5], 0
    %s11 = scalar_lea.sflag [#allocation5], 1
    %12 = vsyncpa %s11, 0
    loop: start=0, step=1, limit=6
    $region2: #{tpu_custom_call.1} parent=1 // loop_pre_header
      _
    $region3: #{tpu_custom_call.1} parent=1 // loop_header
      %s14 = sphi 0, %s18
      %p15 = scmp.ge.s32.totalorder %s14, 6
      %s21 = sphi 0, %s33
      %s22 = sphi 0, %s29
      %s23 = sphi 0, %s21
      %s24 = sphi 0, %s22
      %s25 = sphi 0, %s23
      %s26 = sphi 0, %s24
      %s36 = sphi 0, %s38
      %s39 = sphi 0, %s36
      %s40 = sphi 0, %s39
      %s56 = sphi 0, %s40
      %s60 = sphi 0, %s60
      %s62 = sphi 0, %s60
      %s63 = sphi 0, %s62
      %s77 = sphi 0, %s63
      %s81 = sphi 0, %s81
      %s83 = sphi 0, %s81
      %s84 = sphi 0, %s83
      %s98 = sphi 0, %s84
      %s102 = sphi 0, %s102
      %s104 = sphi 0, %s102
      %s105 = sphi 0, %s104
      %s119 = sphi 0, %s105
      %s123 = sphi 0, %s123
      %s125 = sphi 0, %s123
      %s126 = sphi 0, %s125
      %s140 = sphi 0, %s126
      %s146 = sphi 0, %s148
      %s149 = sphi 0, %s146
      %s150 = sphi 0, %s149
      %s166 = sphi 0, %s150
    $region4: #{tpu_custom_call.1} parent=1 // loop_header_branch
      %17 = sbr.rel (%p15) target = $region8
    $region5: #{tpu_custom_call.1} parent=1 // loop_body
      %s19 = ssub.s32 %s14, 1
      %s20 = ssub.s32 %s14, 2
      %s27 = sadd.s32 1, %s22
      %p28 = scmp.ge.s32.totalorder %s27, 2
      %s29 = scalar_select %p28, 0, %s27
      %s30 = sadd.s32 1, %s21
      %s31 = scalar_select %p28, %s30, %s21
      %p32 = scmp.ge.s32.totalorder %s31, 2
      %s33 = scalar_select %p32, 0, %s31
      %s34 = ssub.s32 %s22, %s29
      %p35 = scmp.eq.s32.totalorder %s34, 0
      %s37 = sadd.s32 %s36, 1
      %s38 = scalar_select %p35, %s36, %s37
      %p41 = pneg %p35
      %p42 = scmp.eq.s32.totalorder %s14, 3
      %p43 = por %p41, %p42
      %p44 = scmp.ne.s32.totalorder %s36, %s39
      %p45 = scmp.eq.s32.totalorder %s14, 0
      %p46 = por %p44, %p45
      %p47 = scmp.ne.s32.totalorder %s36, %s39
      %p48 = scmp.eq.s32.totalorder %s19, 3
      %p49 = por %p47, %p48
      %p50 = scmp.ne.s32.totalorder %s39, %s40
      %p51 = scmp.eq.s32.totalorder %s19, 0
      %p52 = por %p50, %p51
      %p53 = scmp.ne.s32.totalorder %s39, %s40
      %p54 = scmp.eq.s32.totalorder %s20, 3
      %p55 = por %p53, %p54
      %p57 = scmp.ne.s32.totalorder %s40, %s56
      %p58 = scmp.eq.s32.totalorder %s20, 0
      %p59 = por %p57, %p58
      %s61 = sadd.s32 %s60, 1
      %p64 = scmp.eq.s32.totalorder %s14, 3
      %p65 = scmp.ne.s32.totalorder %s60, %s62
      %p66 = scmp.eq.s32.totalorder %s14, 0
      %p67 = por %p65, %p66
      %p68 = scmp.ne.s32.totalorder %s60, %s62
      %p69 = scmp.eq.s32.totalorder %s19, 3
      %p70 = por %p68, %p69
      %p71 = scmp.ne.s32.totalorder %s62, %s63
      %p72 = scmp.eq.s32.totalorder %s19, 0
      %p73 = por %p71, %p72
      %p74 = scmp.ne.s32.totalorder %s62, %s63
      %p75 = scmp.eq.s32.totalorder %s20, 3
      %p76 = por %p74, %p75
      %p78 = scmp.ne.s32.totalorder %s63, %s77
      %p79 = scmp.eq.s32.totalorder %s20, 0
      %p80 = por %p78, %p79
      %s82 = sadd.s32 %s81, 1
      %p85 = scmp.eq.s32.totalorder %s14, 3
      %p86 = scmp.ne.s32.totalorder %s81, %s83
      %p87 = scmp.eq.s32.totalorder %s14, 0
      %p88 = por %p86, %p87
      %p89 = scmp.ne.s32.totalorder %s81, %s83
      %p90 = scmp.eq.s32.totalorder %s19, 3
      %p91 = por %p89, %p90
      %p92 = scmp.ne.s32.totalorder %s83, %s84
      %p93 = scmp.eq.s32.totalorder %s19, 0
      %p94 = por %p92, %p93
      %p95 = scmp.ne.s32.totalorder %s83, %s84
      %p96 = scmp.eq.s32.totalorder %s20, 3
      %p97 = por %p95, %p96
      %p99 = scmp.ne.s32.totalorder %s84, %s98
      %p100 = scmp.eq.s32.totalorder %s20, 0
      %p101 = por %p99, %p100
      %s103 = sadd.s32 %s102, 1
      %p106 = scmp.eq.s32.totalorder %s14, 3
      %p107 = scmp.ne.s32.totalorder %s102, %s104
      %p108 = scmp.eq.s32.totalorder %s14, 0
      %p109 = por %p107, %p108
      %p110 = scmp.ne.s32.totalorder %s102, %s104
      %p111 = scmp.eq.s32.totalorder %s19, 3
      %p112 = por %p110, %p111
      %p113 = scmp.ne.s32.totalorder %s104, %s105
      %p114 = scmp.eq.s32.totalorder %s19, 0
      %p115 = por %p113, %p114
      %p116 = scmp.ne.s32.totalorder %s104, %s105
      %p117 = scmp.eq.s32.totalorder %s20, 3
      %p118 = por %p116, %p117
      %p120 = scmp.ne.s32.totalorder %s105, %s119
      %p121 = scmp.eq.s32.totalorder %s20, 0
      %p122 = por %p120, %p121
      %s124 = sadd.s32 %s123, 1
      %p127 = scmp.eq.s32.totalorder %s14, 3
      %p128 = scmp.ne.s32.totalorder %s123, %s125
      %p129 = scmp.eq.s32.totalorder %s14, 0
      %p130 = por %p128, %p129
      %p131 = scmp.ne.s32.totalorder %s123, %s125
      %p132 = scmp.eq.s32.totalorder %s19, 3
      %p133 = por %p131, %p132
      %p134 = scmp.ne.s32.totalorder %s125, %s126
      %p135 = scmp.eq.s32.totalorder %s19, 0
      %p136 = por %p134, %p135
      %p137 = scmp.ne.s32.totalorder %s125, %s126
      %p138 = scmp.eq.s32.totalorder %s20, 3
      %p139 = por %p137, %p138
      %p141 = scmp.ne.s32.totalorder %s126, %s140
      %p142 = scmp.eq.s32.totalorder %s20, 0
      %p143 = por %p141, %p142
      %s144 = ssub.s32 %s22, %s29
      %p145 = scmp.eq.s32.totalorder %s144, 0
      %s147 = sadd.s32 %s146, 1
      %s148 = scalar_select %p145, %s146, %s147
      %p151 = pneg %p145
      %p152 = scmp.eq.s32.totalorder %s14, 3
      %p153 = por %p151, %p152
      %p154 = scmp.ne.s32.totalorder %s146, %s149
      %p155 = scmp.eq.s32.totalorder %s14, 0
      %p156 = por %p154, %p155
      %p157 = scmp.ne.s32.totalorder %s146, %s149
      %p158 = scmp.eq.s32.totalorder %s19, 3
      %p159 = por %p157, %p158
      %p160 = scmp.ne.s32.totalorder %s149, %s150
      %p161 = scmp.eq.s32.totalorder %s19, 0
      %p162 = por %p160, %p161
      %p163 = scmp.ne.s32.totalorder %s149, %s150
      %p164 = scmp.eq.s32.totalorder %s20, 3
      %p165 = por %p163, %p164
      %p167 = scmp.ne.s32.totalorder %s150, %s166
      %p168 = scmp.eq.s32.totalorder %s20, 0
      %p169 = por %p167, %p168
      %p170 = scmp.le.s32.totalorder 1, %s14
      %p171 = scmp.lt.s32.totalorder %s14, 5
      %p172 = pnand %p170, %p171
      %p173 = pneg %p172
      // Predicated region
      $region9: #{tpu_custom_call.1} parent=5 // pred_check
        _
      $region10: #{tpu_custom_call.1} parent=5 // pred_check_branch
        %175 = sbr.rel (%p172) target = $region12
      $region11: #{tpu_custom_call.1} parent=5 // pred_region
        %s176 = ssub.s32 %s14, 1
        // Predicated region
        $region13: #{tpu_custom_call.1} parent=11 // pred_check
          %p177 = pneg %p73
        $region14: #{tpu_custom_call.1} parent=11 // pred_check_branch
          %179 = sbr.rel (%p177) target = $region16
        $region15: #{tpu_custom_call.1} parent=11 // pred_region
          _
        $region16: #{tpu_custom_call.1} parent=11 // pred_fallthru
          _
        // Predicated region
        $region17: #{tpu_custom_call.1} parent=11 // pred_check
          %p180 = pneg %p94
        $region18: #{tpu_custom_call.1} parent=11 // pred_check_branch
          %182 = sbr.rel (%p180) target = $region20
        $region19: #{tpu_custom_call.1} parent=11 // pred_region
          _
        $region20: #{tpu_custom_call.1} parent=11 // pred_fallthru
          _
        // Predicated region
        $region21: #{tpu_custom_call.1} parent=11 // pred_check
          %p183 = pneg %p115
        $region22: #{tpu_custom_call.1} parent=11 // pred_check_branch
          %185 = sbr.rel (%p183) target = $region24
        $region23: #{tpu_custom_call.1} parent=11 // pred_region
          _
        $region24: #{tpu_custom_call.1} parent=11 // pred_fallthru
          _
        // Predicated region
        $region25: #{tpu_custom_call.1} parent=11 // pred_check
          %p186 = pneg %p136
        $region26: #{tpu_custom_call.1} parent=11 // pred_check_branch
          %188 = sbr.rel (%p186) target = $region28
        $region27: #{tpu_custom_call.1} parent=11 // pred_region
          _
        $region28: #{tpu_custom_call.1} parent=11 // pred_fallthru
          _
      $region12: #{tpu_custom_call.1} parent=5 // pred_fallthru
        _
      %p189 = scmp.lt.s32.totalorder %s14, 4
      // Predicated region
      $region29: #{tpu_custom_call.1} parent=5 // pred_check
        %p190 = pneg %p189
      $region30: #{tpu_custom_call.1} parent=5 // pred_check_branch
        %192 = sbr.rel (%p190) target = $region32
      $region31: #{tpu_custom_call.1} parent=5 // pred_region
        // Predicated region
        $region33: #{tpu_custom_call.1} parent=31 // pred_check
          %p193 = pneg %p46
        $region34: #{tpu_custom_call.1} parent=31 // pred_check_branch
          %195 = sbr.rel (%p193) target = $region36
        $region35: #{tpu_custom_call.1} parent=31 // pred_region
          %p196 = scmp.lt.s32.totalorder %s22, 1
          %s197 = scalar_select %p196, %s22, 1
          %s198 = smul.addr %s197, 4
          %s199 = smul.addr %s198, 4
          %s200 = scalar_lea.vmem %s0, %s199
        $region36: #{tpu_custom_call.1} parent=31 // pred_fallthru
          _
      $region32: #{tpu_custom_call.1} parent=5 // pred_fallthru
        _
      %p201 = scmp.le.s32.totalorder 1, %s14
      %p202 = scmp.lt.s32.totalorder %s14, 5
      %p203 = pnand %p201, %p202
      %p204 = pneg %p203
      // Predicated region
      $region37: #{tpu_custom_call.1} parent=5 // pred_check
        _
      $region38: #{tpu_custom_call.1} parent=5 // pred_check_branch
        %206 = sbr.rel (%p203) target = $region40
      $region39: #{tpu_custom_call.1} parent=5 // pred_region
        %s207 = ssub.s32 %s14, 1
        %p208 = scmp.lt.s32.totalorder %s24, 1
        %s209 = scalar_select %p208, %s24, 1
        %s210 = smul.addr %s209, 4
        %s211 = smul.addr %s210, 4
        %s212 = scalar_lea.vmem %s0, %s211
        %p213 = pneg %p52
        %p214 = pneg %p49
        %p215 = pneg %p73
        %p216 = pneg %p70
        %p217 = pneg %p94
        %p218 = pneg %p91
        %p219 = pneg %p115
        %p220 = pneg %p112
        %p221 = pneg %p136
        %p222 = pneg %p133
        %p223 = pneg %p162
        %p224 = pneg %p159
        %s225 = sand.u32 %s149, 1
        %s226 = scalar_lea.sflag [#allocation5], %s225
        %s227 = sand.u32 %s149, 1
        %s228 = smul.addr %s227, 24
        %s229 = scalar_lea.vmem [#allocation4], %s228
        %p230 = scmp.lt.s32.totalorder %s24, 1
        %s231 = scalar_select %p230, %s24, 1
        %s232 = smul.addr %s231, 4
        %s233 = smul.addr %s232, 4
        %s234 = scalar_lea.vmem %s0, %s233
        %p235 = scmp.eq.s32.totalorder %s23, 0
        %p236 = scmp.eq.s32.totalorder %s24, 0
        %p237 = pnand %p235, %p236
        %p238 = pneg %p237
        // Predicated region
        $region41: #{tpu_custom_call.1} parent=39 // pred_check
          _
        $region42: #{tpu_custom_call.1} parent=39 // pred_check_branch
          %240 = sbr.rel (%p237) target = $region44
        $region43: #{tpu_custom_call.1} parent=39 // pred_region
          %vm241 = vcmask 7168
          %242 = vst.msk [vmem:[#allocation2] sm:$0xff] %vm241, 0.0
          %243 = vst.msk [vmem:[#allocation3] sm:$0xff] %vm241, 0.0
        $region44: #{tpu_custom_call.1} parent=39 // pred_fallthru
          _
        %v244 = vld [vmem:[%s234] sm:$0xff]
        %v245 = vld [vmem:[%s234 + $0x8] sm:$0xf]
        %v246 = vld [vmem:[%s1] sm:$0xff]
        %v247 = vld [vmem:[%s234] sm:$0xff]
        %v248 = vld [vmem:[%s234 + $0x8] sm:$0xff]
        %s249 = scalar_lea.vmem %s1, 8
        %v250 = vld [vmem:[%s249] sm:$0xff]
        %253 = vst [vmem:[#allocation1] ss:$2 sm:$0xff] %v247
        %s254 = scalar_lea.vmem [#allocation1], 16
        %255 = vst [vmem:[%s254] ss:$2 sm:$0xff] %v248
        %v256 = vld.sshfl [vmem:[#allocation1] sm:$0xff pattern:$0x75316420]
        %v257 = vld.sshfl [vmem:[#allocation1 + $0x8] sm:$0xff pattern:$0x75316420]
        %v258 = vld.sshfl [vmem:[#allocation1 + $0x10] sm:$0xff pattern:$0x75316420]
        %v259 = vld.sshfl [vmem:[#allocation1 + $0x18] sm:$0xff pattern:$0x75316420]
        %260 = vrot.lane.b32.xlu0 %v256, 127
        %v261 = vpop.permute.xlu0 %260
        %262 = vrot.lane.b32.xlu0 %v257, 127
        %v263 = vpop.permute.xlu0 %262
        %264 = vrot.lane.b32.xlu0 %v258, 127
        %v265 = vpop.permute.xlu0 %264
        %266 = vrot.lane.b32.xlu0 %v259, 127
        %v267 = vpop.permute.xlu0 %266
        %vm268 = vcmask 1039360
        %v269 = vsel %vm268, %v261, %v263
        %v270 = vsel %vm268, %v263, %v265
        %v271 = vsel %vm268, %v265, %v267
        %vm272 = vcmask 31744
        %v274 = vsel %vm272, %v250, 0
        %vm276 = vcmask 1043456
        %v277 = vsel %vm276, %v269, 0
        %v279 = vsel %vm276, %v270, 0
        %v281 = vsel %vm276, %v271, 0
        %283 = vmatpush.msra.mxu0 0.0
        %284 = vmatpush.msra.mxu0 0.0
        %285 = vmatpush.msra.mxu0 0.0
        %286 = vmatpush.msra.mxu0 0.0
        %287 = vmatpush.msra.mxu0 0.0
        %288 = vmatpush.msra.mxu0 0.0
        %289 = vmatpush.msra.mxu0 0.0
        %290 = vmatpush.msra.mxu0 0.0
        %291 = vmatpush.msra.mxu0 0.0
        %292 = vmatpush.msra.mxu0 0.0
        %293 = vmatpush.msra.mxu0 0.0
        %294 = vmatpush.msra.mxu0 0.0
        %295 = vmatpush.msra.mxu0 0.0
        %296 = vmatpush.msra.mxu0 0.0
        %297 = vmatpush.msra.mxu0 0.0
        %298 = vmatpush.msra.mxu0 %v277
        %299 = vmatmul.f32.gmra.mxu0 %v274
        %v300 = vpop.f32.mrf.mxu0
        %v301 = vadd.f32 0.0, %v300
        %302 = vdwg.mxu0
        %303 = vmatpush.msra.mxu0 0.0
        %304 = vmatpush.msra.mxu0 0.0
        %305 = vmatpush.msra.mxu0 0.0
        %306 = vmatpush.msra.mxu0 0.0
        %307 = vmatpush.msra.mxu0 0.0
        %308 = vmatpush.msra.mxu0 0.0
        %309 = vmatpush.msra.mxu0 0.0
        %310 = vmatpush.msra.mxu0 0.0
        %311 = vmatpush.msra.mxu0 0.0
        %312 = vmatpush.msra.mxu0 0.0
        %313 = vmatpush.msra.mxu0 0.0
        %314 = vmatpush.msra.mxu0 0.0
        %315 = vmatpush.msra.mxu0 0.0
        %316 = vmatpush.msra.mxu0 0.0
        %317 = vmatpush.msra.mxu0 0.0
        %318 = vmatpush.msra.mxu0 %v279
        %319 = vmatmul.f32.gmra.mxu0 %v274
        %v320 = vpop.f32.mrf.mxu0
        %v321 = vadd.f32 0.0, %v320
        %322 = vdwg.mxu0
        %323 = vmatpush.msra.mxu0 0.0
        %324 = vmatpush.msra.mxu0 0.0
        %325 = vmatpush.msra.mxu0 0.0
        %326 = vmatpush.msra.mxu0 0.0
        %327 = vmatpush.msra.mxu0 0.0
        %328 = vmatpush.msra.mxu0 0.0
        %329 = vmatpush.msra.mxu0 0.0
        %330 = vmatpush.msra.mxu0 0.0
        %331 = vmatpush.msra.mxu0 0.0
        %332 = vmatpush.msra.mxu0 0.0
        %333 = vmatpush.msra.mxu0 0.0
        %334 = vmatpush.msra.mxu0 0.0
        %335 = vmatpush.msra.mxu0 0.0
        %336 = vmatpush.msra.mxu0 0.0
        %337 = vmatpush.msra.mxu0 0.0
        %338 = vmatpush.msra.mxu0 %v281
        %339 = vmatmul.f32.gmra.mxu0 %v274
        %v340 = vpop.f32.mrf.mxu0
        %v341 = vadd.f32 0.0, %v340
        %342 = vdwg.mxu0
        %345 = vst [vmem:[#allocation1] ss:$2 sm:$0xff] %v244
        %s346 = scalar_lea.vmem [#allocation1], 16
        %347 = vst [vmem:[%s346] ss:$2 sm:$0xff] %v245
        %v348 = vld.sshfl [vmem:[#allocation1] sm:$0xff pattern:$0x75316420]
        %v349 = vld.sshfl [vmem:[#allocation1 + $0x8] sm:$0xff pattern:$0x75316420]
        %v350 = vld.sshfl [vmem:[#allocation1 + $0x10] sm:$0xff pattern:$0x75316420]
        %v352 = vsel %vm272, %v246, 0
        %v354 = vsel %vm276, %v348, 0
        %v356 = vsel %vm276, %v349, 0
        %v358 = vsel %vm276, %v350, 0
        %360 = vmatpush.msra.mxu0 0.0
        %361 = vmatpush.msra.mxu0 0.0
        %362 = vmatpush.msra.mxu0 0.0
        %363 = vmatpush.msra.mxu0 0.0
        %364 = vmatpush.msra.mxu0 0.0
        %365 = vmatpush.msra.mxu0 0.0
        %366 = vmatpush.msra.mxu0 0.0
        %367 = vmatpush.msra.mxu0 0.0
        %368 = vmatpush.msra.mxu0 0.0
        %369 = vmatpush.msra.mxu0 0.0
        %370 = vmatpush.msra.mxu0 0.0
        %371 = vmatpush.msra.mxu0 0.0
        %372 = vmatpush.msra.mxu0 0.0
        %373 = vmatpush.msra.mxu0 0.0
        %374 = vmatpush.msra.mxu0 0.0
        %375 = vmatpush.msra.mxu0 %v354
        %376 = vmatmul.f32.gmra.mxu0 %v352
        %v377 = vpop.f32.mrf.mxu0
        %v378 = vadd.f32 %v301, %v377
        %379 = vdwg.mxu0
        %380 = vmatpush.msra.mxu0 0.0
        %381 = vmatpush.msra.mxu0 0.0
        %382 = vmatpush.msra.mxu0 0.0
        %383 = vmatpush.msra.mxu0 0.0
        %384 = vmatpush.msra.mxu0 0.0
        %385 = vmatpush.msra.mxu0 0.0
        %386 = vmatpush.msra.mxu0 0.0
        %387 = vmatpush.msra.mxu0 0.0
        %388 = vmatpush.msra.mxu0 0.0
        %389 = vmatpush.msra.mxu0 0.0
        %390 = vmatpush.msra.mxu0 0.0
        %391 = vmatpush.msra.mxu0 0.0
        %392 = vmatpush.msra.mxu0 0.0
        %393 = vmatpush.msra.mxu0 0.0
        %394 = vmatpush.msra.mxu0 0.0
        %395 = vmatpush.msra.mxu0 %v356
        %396 = vmatmul.f32.gmra.mxu0 %v352
        %v397 = vpop.f32.mrf.mxu0
        %v398 = vadd.f32 %v321, %v397
        %399 = vdwg.mxu0
        %400 = vmatpush.msra.mxu0 0.0
        %401 = vmatpush.msra.mxu0 0.0
        %402 = vmatpush.msra.mxu0 0.0
        %403 = vmatpush.msra.mxu0 0.0
        %404 = vmatpush.msra.mxu0 0.0
        %405 = vmatpush.msra.mxu0 0.0
        %406 = vmatpush.msra.mxu0 0.0
        %407 = vmatpush.msra.mxu0 0.0
        %408 = vmatpush.msra.mxu0 0.0
        %409 = vmatpush.msra.mxu0 0.0
        %410 = vmatpush.msra.mxu0 0.0
        %411 = vmatpush.msra.mxu0 0.0
        %412 = vmatpush.msra.mxu0 0.0
        %413 = vmatpush.msra.mxu0 0.0
        %414 = vmatpush.msra.mxu0 0.0
        %415 = vmatpush.msra.mxu0 %v358
        %416 = vmatmul.f32.gmra.mxu0 %v352
        %v417 = vpop.f32.mrf.mxu0
        %v418 = vadd.f32 %v341, %v417
        %419 = vdwg.mxu0
        %v420 = vld [vmem:[%s234] sm:$0xff]
        %v421 = vld [vmem:[%s234 + $0x8] sm:$0xff]
        %s422 = scalar_lea.vmem %s1, 16
        %v423 = vld [vmem:[%s422] sm:$0xff]
        %426 = vst [vmem:[#allocation1] ss:$2 sm:$0xff] %v420
        %s427 = scalar_lea.vmem [#allocation1], 16
        %428 = vst [vmem:[%s427] ss:$2 sm:$0xff] %v421
        %v429 = vld.sshfl [vmem:[#allocation1] sm:$0xff pattern:$0x75316420]
        %v430 = vld.sshfl [vmem:[#allocation1 + $0x8] sm:$0xff pattern:$0x75316420]
        %v431 = vld.sshfl [vmem:[#allocation1 + $0x10] sm:$0xff pattern:$0x75316420]
        %v432 = vld.sshfl [vmem:[#allocation1 + $0x18] sm:$0xff pattern:$0x75316420]
        %433 = vrot.lane.b32.xlu0 %v429, 126
        %v434 = vpop.permute.xlu0 %433
        %435 = vrot.lane.b32.xlu0 %v430, 126
        %v436 = vpop.permute.xlu0 %435
        %437 = vrot.lane.b32.xlu0 %v431, 126
        %v438 = vpop.permute.xlu0 %437
        %439 = vrot.lane.b32.xlu0 %v432, 126
        %v440 = vpop.permute.xlu0 %439
        %vm441 = vcmask 1031168
        %v442 = vsel %vm441, %v434, %v436
        %v443 = vsel %vm441, %v436, %v438
        %v444 = vsel %vm441, %v438, %v440
        %v446 = vsel %vm272, %v423, 0
        %v448 = vsel %vm276, %v442, 0
        %v450 = vsel %vm276, %v443, 0
        %v452 = vsel %vm276, %v444, 0
        %454 = vmatpush.msra.mxu0 0.0
        %455 = vmatpush.msra.mxu0 0.0
        %456 = vmatpush.msra.mxu0 0.0
        %457 = vmatpush.msra.mxu0 0.0
        %458 = vmatpush.msra.mxu0 0.0
        %459 = vmatpush.msra.mxu0 0.0
        %460 = vmatpush.msra.mxu0 0.0
        %461 = vmatpush.msra.mxu0 0.0
        %462 = vmatpush.msra.mxu0 0.0
        %463 = vmatpush.msra.mxu0 0.0
        %464 = vmatpush.msra.mxu0 0.0
        %465 = vmatpush.msra.mxu0 0.0
        %466 = vmatpush.msra.mxu0 0.0
        %467 = vmatpush.msra.mxu0 0.0
        %468 = vmatpush.msra.mxu0 0.0
        %469 = vmatpush.msra.mxu0 %v448
        %470 = vmatmul.f32.gmra.mxu0 %v446
        %v471 = vpop.f32.mrf.mxu0
        %v472 = vadd.f32 0.0, %v471
        %473 = vdwg.mxu0
        %474 = vmatpush.msra.mxu0 0.0
        %475 = vmatpush.msra.mxu0 0.0
        %476 = vmatpush.msra.mxu0 0.0
        %477 = vmatpush.msra.mxu0 0.0
        %478 = vmatpush.msra.mxu0 0.0
        %479 = vmatpush.msra.mxu0 0.0
        %480 = vmatpush.msra.mxu0 0.0
        %481 = vmatpush.msra.mxu0 0.0
        %482 = vmatpush.msra.mxu0 0.0
        %483 = vmatpush.msra.mxu0 0.0
        %484 = vmatpush.msra.mxu0 0.0
        %485 = vmatpush.msra.mxu0 0.0
        %486 = vmatpush.msra.mxu0 0.0
        %487 = vmatpush.msra.mxu0 0.0
        %488 = vmatpush.msra.mxu0 0.0
        %489 = vmatpush.msra.mxu0 %v450
        %490 = vmatmul.f32.gmra.mxu0 %v446
        %v491 = vpop.f32.mrf.mxu0
        %v492 = vadd.f32 0.0, %v491
        %493 = vdwg.mxu0
        %494 = vmatpush.msra.mxu0 0.0
        %495 = vmatpush.msra.mxu0 0.0
        %496 = vmatpush.msra.mxu0 0.0
        %497 = vmatpush.msra.mxu0 0.0
        %498 = vmatpush.msra.mxu0 0.0
        %499 = vmatpush.msra.mxu0 0.0
        %500 = vmatpush.msra.mxu0 0.0
        %501 = vmatpush.msra.mxu0 0.0
        %502 = vmatpush.msra.mxu0 0.0
        %503 = vmatpush.msra.mxu0 0.0
        %504 = vmatpush.msra.mxu0 0.0
        %505 = vmatpush.msra.mxu0 0.0
        %506 = vmatpush.msra.mxu0 0.0
        %507 = vmatpush.msra.mxu0 0.0
        %508 = vmatpush.msra.mxu0 0.0
        %509 = vmatpush.msra.mxu0 %v452
        %510 = vmatmul.f32.gmra.mxu0 %v446
        %v511 = vpop.f32.mrf.mxu0
        %v512 = vadd.f32 0.0, %v511
        %513 = vdwg.mxu0
        %v514 = vadd.f32 %v378, %v472
        %v515 = vadd.f32 %v398, %v492
        %v516 = vadd.f32 %v418, %v512
        %v517 = vld [vmem:[%s234] sm:$0xff]
        %v518 = vld [vmem:[%s234 + $0x8] sm:$0xff]
        %s519 = scalar_lea.vmem %s1, 24
        %v520 = vld [vmem:[%s519] sm:$0xff]
        %523 = vst [vmem:[#allocation1] ss:$2 sm:$0xff] %v517
        %s524 = scalar_lea.vmem [#allocation1], 16
        %525 = vst [vmem:[%s524] ss:$2 sm:$0xff] %v518
        %v526 = vld.sshfl [vmem:[#allocation1] sm:$0xff pattern:$0x75316420]
        %v527 = vld.sshfl [vmem:[#allocation1 + $0x8] sm:$0xff pattern:$0x75316420]
        %v528 = vld.sshfl [vmem:[#allocation1 + $0x10] sm:$0xff pattern:$0x75316420]
        %v529 = vld.sshfl [vmem:[#allocation1 + $0x18] sm:$0xff pattern:$0x75316420]
        %530 = vrot.lane.b32.xlu0 %v526, 110
        %v531 = vpop.permute.xlu0 %530
        %532 = vrot.lane.b32.xlu0 %v527, 110
        %v533 = vpop.permute.xlu0 %532
        %534 = vrot.lane.b32.xlu0 %v528, 110
        %v535 = vpop.permute.xlu0 %534
        %536 = vrot.lane.b32.xlu0 %v529, 110
        %v537 = vpop.permute.xlu0 %536
        %vm538 = vcmask 900096
        %v539 = vsel %vm538, %v531, %v533
        %v540 = vsel %vm538, %v533, %v535
        %v541 = vsel %vm538, %v535, %v537
        %v543 = vsel %vm272, %v520, 0
        %v545 = vsel %vm276, %v539, 0
        %v547 = vsel %vm276, %v540, 0
        %v549 = vsel %vm276, %v541, 0
        %551 = vmatpush.msra.mxu0 0.0
        %552 = vmatpush.msra.mxu0 0.0
        %553 = vmatpush.msra.mxu0 0.0
        %554 = vmatpush.msra.mxu0 0.0
        %555 = vmatpush.msra.mxu0 0.0
        %556 = vmatpush.msra.mxu0 0.0
        %557 = vmatpush.msra.mxu0 0.0
        %558 = vmatpush.msra.mxu0 0.0
        %559 = vmatpush.msra.mxu0 0.0
        %560 = vmatpush.msra.mxu0 0.0
        %561 = vmatpush.msra.mxu0 0.0
        %562 = vmatpush.msra.mxu0 0.0
        %563 = vmatpush.msra.mxu0 0.0
        %564 = vmatpush.msra.mxu0 0.0
        %565 = vmatpush.msra.mxu0 0.0
        %566 = vmatpush.msra.mxu0 %v545
        %567 = vmatmul.f32.gmra.mxu0 %v543
        %v568 = vpop.f32.mrf.mxu0
        %v569 = vadd.f32 0.0, %v568
        %570 = vdwg.mxu0
        %571 = vmatpush.msra.mxu0 0.0
        %572 = vmatpush.msra.mxu0 0.0
        %573 = vmatpush.msra.mxu0 0.0
        %574 = vmatpush.msra.mxu0 0.0
        %575 = vmatpush.msra.mxu0 0.0
        %576 = vmatpush.msra.mxu0 0.0
        %577 = vmatpush.msra.mxu0 0.0
        %578 = vmatpush.msra.mxu0 0.0
        %579 = vmatpush.msra.mxu0 0.0
        %580 = vmatpush.msra.mxu0 0.0
        %581 = vmatpush.msra.mxu0 0.0
        %582 = vmatpush.msra.mxu0 0.0
        %583 = vmatpush.msra.mxu0 0.0
        %584 = vmatpush.msra.mxu0 0.0
        %585 = vmatpush.msra.mxu0 0.0
        %586 = vmatpush.msra.mxu0 %v547
        %587 = vmatmul.f32.gmra.mxu0 %v543
        %v588 = vpop.f32.mrf.mxu0
        %v589 = vadd.f32 0.0, %v588
        %590 = vdwg.mxu0
        %591 = vmatpush.msra.mxu0 0.0
        %592 = vmatpush.msra.mxu0 0.0
        %593 = vmatpush.msra.mxu0 0.0
        %594 = vmatpush.msra.mxu0 0.0
        %595 = vmatpush.msra.mxu0 0.0
        %596 = vmatpush.msra.mxu0 0.0
        %597 = vmatpush.msra.mxu0 0.0
        %598 = vmatpush.msra.mxu0 0.0
        %599 = vmatpush.msra.mxu0 0.0
        %600 = vmatpush.msra.mxu0 0.0
        %601 = vmatpush.msra.mxu0 0.0
        %602 = vmatpush.msra.mxu0 0.0
        %603 = vmatpush.msra.mxu0 0.0
        %604 = vmatpush.msra.mxu0 0.0
        %605 = vmatpush.msra.mxu0 0.0
        %606 = vmatpush.msra.mxu0 %v549
        %607 = vmatmul.f32.gmra.mxu0 %v543
        %v608 = vpop.f32.mrf.mxu0
        %v609 = vadd.f32 0.0, %v608
        %610 = vdwg.mxu0
        %v611 = vadd.f32 %v514, %v569
        %v612 = vadd.f32 %v515, %v589
        %v613 = vadd.f32 %v516, %v609
        %v614 = vld [vmem:[%s234] sm:$0xff]
        %v615 = vld [vmem:[%s234 + $0x8] sm:$0xff]
        %s616 = scalar_lea.vmem %s1, 32
        %v617 = vld [vmem:[%s616] sm:$0xff]
        %620 = vst [vmem:[#allocation1] ss:$2 sm:$0xff] %v614
        %s621 = scalar_lea.vmem [#allocation1], 16
        %622 = vst [vmem:[%s621] ss:$2 sm:$0xff] %v615
        %v623 = vld.sshfl [vmem:[#allocation1] sm:$0xff pattern:$0x75316420]
        %v624 = vld.sshfl [vmem:[#allocation1 + $0x8] sm:$0xff pattern:$0x75316420]
        %v625 = vld.sshfl [vmem:[#allocation1 + $0x10] sm:$0xff pattern:$0x75316420]
        %v626 = vld.sshfl [vmem:[#allocation1 + $0x18] sm:$0xff pattern:$0x75316420]
        %627 = vrot.lane.b32.xlu0 %v623, 109
        %v628 = vpop.permute.xlu0 %627
        %629 = vrot.lane.b32.xlu0 %v624, 109
        %v630 = vpop.permute.xlu0 %629
        %631 = vrot.lane.b32.xlu0 %v625, 109
        %v632 = vpop.permute.xlu0 %631
        %633 = vrot.lane.b32.xlu0 %v626, 109
        %v634 = vpop.permute.xlu0 %633
        %vm635 = vcmask 891904
        %v636 = vsel %vm635, %v628, %v630
        %v637 = vsel %vm635, %v630, %v632
        %v638 = vsel %vm635, %v632, %v634
        %v640 = vsel %vm272, %v617, 0
        %v642 = vsel %vm276, %v636, 0
        %v644 = vsel %vm276, %v637, 0
        %v646 = vsel %vm276, %v638, 0
        %648 = vmatpush.msra.mxu0 0.0
        %649 = vmatpush.msra.mxu0 0.0
        %650 = vmatpush.msra.mxu0 0.0
        %651 = vmatpush.msra.mxu0 0.0
        %652 = vmatpush.msra.mxu0 0.0
        %653 = vmatpush.msra.mxu0 0.0
        %654 = vmatpush.msra.mxu0 0.0
        %655 = vmatpush.msra.mxu0 0.0
        %656 = vmatpush.msra.mxu0 0.0
        %657 = vmatpush.msra.mxu0 0.0
        %658 = vmatpush.msra.mxu0 0.0
        %659 = vmatpush.msra.mxu0 0.0
        %660 = vmatpush.msra.mxu0 0.0
        %661 = vmatpush.msra.mxu0 0.0
        %662 = vmatpush.msra.mxu0 0.0
        %663 = vmatpush.msra.mxu0 %v642
        %664 = vmatmul.f32.gmra.mxu0 %v640
        %v665 = vpop.f32.mrf.mxu0
        %v666 = vadd.f32 0.0, %v665
        %667 = vdwg.mxu0
        %668 = vmatpush.msra.mxu0 0.0
        %669 = vmatpush.msra.mxu0 0.0
        %670 = vmatpush.msra.mxu0 0.0
        %671 = vmatpush.msra.mxu0 0.0
        %672 = vmatpush.msra.mxu0 0.0
        %673 = vmatpush.msra.mxu0 0.0
        %674 = vmatpush.msra.mxu0 0.0
        %675 = vmatpush.msra.mxu0 0.0
        %676 = vmatpush.msra.mxu0 0.0
        %677 = vmatpush.msra.mxu0 0.0
        %678 = vmatpush.msra.mxu0 0.0
        %679 = vmatpush.msra.mxu0 0.0
        %680 = vmatpush.msra.mxu0 0.0
        %681 = vmatpush.msra.mxu0 0.0
        %682 = vmatpush.msra.mxu0 0.0
        %683 = vmatpush.msra.mxu0 %v644
        %684 = vmatmul.f32.gmra.mxu0 %v640
        %v685 = vpop.f32.mrf.mxu0
        %v686 = vadd.f32 0.0, %v685
        %687 = vdwg.mxu0
        %688 = vmatpush.msra.mxu0 0.0
        %689 = vmatpush.msra.mxu0 0.0
        %690 = vmatpush.msra.mxu0 0.0
        %691 = vmatpush.msra.mxu0 0.0
        %692 = vmatpush.msra.mxu0 0.0
        %693 = vmatpush.msra.mxu0 0.0
        %694 = vmatpush.msra.mxu0 0.0
        %695 = vmatpush.msra.mxu0 0.0
        %696 = vmatpush.msra.mxu0 0.0
        %697 = vmatpush.msra.mxu0 0.0
        %698 = vmatpush.msra.mxu0 0.0
        %699 = vmatpush.msra.mxu0 0.0
        %700 = vmatpush.msra.mxu0 0.0
        %701 = vmatpush.msra.mxu0 0.0
        %702 = vmatpush.msra.mxu0 0.0
        %703 = vmatpush.msra.mxu0 %v646
        %704 = vmatmul.f32.gmra.mxu0 %v640
        %v705 = vpop.f32.mrf.mxu0
        %v706 = vadd.f32 0.0, %v705
        %707 = vdwg.mxu0
        %v708 = vadd.f32 %v611, %v666
        %v709 = vadd.f32 %v612, %v686
        %v710 = vadd.f32 %v613, %v706
        %v711 = vld [vmem:[%s234] sm:$0xff]
        %v712 = vld [vmem:[%s234 + $0x8] sm:$0xff]
        %s713 = scalar_lea.vmem %s1, 40
        %v714 = vld [vmem:[%s713] sm:$0xff]
        %717 = vst [vmem:[#allocation1] ss:$2 sm:$0xff] %v711
        %s718 = scalar_lea.vmem [#allocation1], 16
        %719 = vst [vmem:[%s718] ss:$2 sm:$0xff] %v712
        %v720 = vld.sshfl [vmem:[#allocation1] sm:$0xff pattern:$0x75316420]
        %v721 = vld.sshfl [vmem:[#allocation1 + $0x8] sm:$0xff pattern:$0x75316420]
        %v722 = vld.sshfl [vmem:[#allocation1 + $0x10] sm:$0xff pattern:$0x75316420]
        %v723 = vld.sshfl [vmem:[#allocation1 + $0x18] sm:$0xff pattern:$0x75316420]
        %724 = vrot.lane.b32.xlu0 %v720, 108
        %v725 = vpop.permute.xlu0 %724
        %726 = vrot.lane.b32.xlu0 %v721, 108
        %v727 = vpop.permute.xlu0 %726
        %728 = vrot.lane.b32.xlu0 %v722, 108
        %v729 = vpop.permute.xlu0 %728
        %730 = vrot.lane.b32.xlu0 %v723, 108
        %v731 = vpop.permute.xlu0 %730
        %vm732 = vcmask 883712
        %v733 = vsel %vm732, %v725, %v727
        %v734 = vsel %vm732, %v727, %v729
        %v735 = vsel %vm732, %v729, %v731
        %v737 = vsel %vm272, %v714, 0
        %v739 = vsel %vm276, %v733, 0
        %v741 = vsel %vm276, %v734, 0
        %v743 = vsel %vm276, %v735, 0
        %745 = vmatpush.msra.mxu0 0.0
        %746 = vmatpush.msra.mxu0 0.0
        %747 = vmatpush.msra.mxu0 0.0
        %748 = vmatpush.msra.mxu0 0.0
        %749 = vmatpush.msra.mxu0 0.0
        %750 = vmatpush.msra.mxu0 0.0
        %751 = vmatpush.msra.mxu0 0.0
        %752 = vmatpush.msra.mxu0 0.0
        %753 = vmatpush.msra.mxu0 0.0
        %754 = vmatpush.msra.mxu0 0.0
        %755 = vmatpush.msra.mxu0 0.0
        %756 = vmatpush.msra.mxu0 0.0
        %757 = vmatpush.msra.mxu0 0.0
        %758 = vmatpush.msra.mxu0 0.0
        %759 = vmatpush.msra.mxu0 0.0
        %760 = vmatpush.msra.mxu0 %v739
        %761 = vmatmul.f32.gmra.mxu0 %v737
        %v762 = vpop.f32.mrf.mxu0
        %v763 = vadd.f32 0.0, %v762
        %764 = vdwg.mxu0
        %765 = vmatpush.msra.mxu0 0.0
        %766 = vmatpush.msra.mxu0 0.0
        %767 = vmatpush.msra.mxu0 0.0
        %768 = vmatpush.msra.mxu0 0.0
        %769 = vmatpush.msra.mxu0 0.0
        %770 = vmatpush.msra.mxu0 0.0
        %771 = vmatpush.msra.mxu0 0.0
        %772 = vmatpush.msra.mxu0 0.0
        %773 = vmatpush.msra.mxu0 0.0
        %774 = vmatpush.msra.mxu0 0.0
        %775 = vmatpush.msra.mxu0 0.0
        %776 = vmatpush.msra.mxu0 0.0
        %777 = vmatpush.msra.mxu0 0.0
        %778 = vmatpush.msra.mxu0 0.0
        %779 = vmatpush.msra.mxu0 0.0
        %780 = vmatpush.msra.mxu0 %v741
        %781 = vmatmul.f32.gmra.mxu0 %v737
        %v782 = vpop.f32.mrf.mxu0
        %v783 = vadd.f32 0.0, %v782
        %784 = vdwg.mxu0
        %785 = vmatpush.msra.mxu0 0.0
        %786 = vmatpush.msra.mxu0 0.0
        %787 = vmatpush.msra.mxu0 0.0
        %788 = vmatpush.msra.mxu0 0.0
        %789 = vmatpush.msra.mxu0 0.0
        %790 = vmatpush.msra.mxu0 0.0
        %791 = vmatpush.msra.mxu0 0.0
        %792 = vmatpush.msra.mxu0 0.0
        %793 = vmatpush.msra.mxu0 0.0
        %794 = vmatpush.msra.mxu0 0.0
        %795 = vmatpush.msra.mxu0 0.0
        %796 = vmatpush.msra.mxu0 0.0
        %797 = vmatpush.msra.mxu0 0.0
        %798 = vmatpush.msra.mxu0 0.0
        %799 = vmatpush.msra.mxu0 0.0
        %800 = vmatpush.msra.mxu0 %v743
        %801 = vmatmul.f32.gmra.mxu0 %v737
        %v802 = vpop.f32.mrf.mxu0
        %v803 = vadd.f32 0.0, %v802
        %804 = vdwg.mxu0
        %v805 = vadd.f32 %v708, %v763
        %v806 = vadd.f32 %v709, %v783
        %v807 = vadd.f32 %v710, %v803
        %v808 = vld [vmem:[%s234] sm:$0xff]
        %v809 = vld [vmem:[%s234 + $0x8] sm:$0xff]
        %s810 = scalar_lea.vmem %s1, 48
        %v811 = vld [vmem:[%s810] sm:$0xff]
        %814 = vst [vmem:[#allocation1] ss:$2 sm:$0xff] %v808
        %s815 = scalar_lea.vmem [#allocation1], 16
        %816 = vst [vmem:[%s815] ss:$2 sm:$0xff] %v809
        %v817 = vld.sshfl [vmem:[#allocation1] sm:$0xff pattern:$0x75316420]
        %v818 = vld.sshfl [vmem:[#allocation1 + $0x8] sm:$0xff pattern:$0x75316420]
        %v819 = vld.sshfl [vmem:[#allocation1 + $0x10] sm:$0xff pattern:$0x75316420]
        %v820 = vld.sshfl [vmem:[#allocation1 + $0x18] sm:$0xff pattern:$0x75316420]
        %821 = vrot.lane.b32.xlu0 %v817, 92
        %v822 = vpop.permute.xlu0 %821
        %823 = vrot.lane.b32.xlu0 %v818, 92
        %v824 = vpop.permute.xlu0 %823
        %825 = vrot.lane.b32.xlu0 %v819, 92
        %v826 = vpop.permute.xlu0 %825
        %827 = vrot.lane.b32.xlu0 %v820, 92
        %v828 = vpop.permute.xlu0 %827
        %vm829 = vcmask 752640
        %v830 = vsel %vm829, %v822, %v824
        %v831 = vsel %vm829, %v824, %v826
        %v832 = vsel %vm829, %v826, %v828
        %v834 = vsel %vm272, %v811, 0
        %v836 = vsel %vm276, %v830, 0
        %v838 = vsel %vm276, %v831, 0
        %v840 = vsel %vm276, %v832, 0
        %842 = vmatpush.msra.mxu0 0.0
        %843 = vmatpush.msra.mxu0 0.0
        %844 = vmatpush.msra.mxu0 0.0
        %845 = vmatpush.msra.mxu0 0.0
        %846 = vmatpush.msra.mxu0 0.0
        %847 = vmatpush.msra.mxu0 0.0
        %848 = vmatpush.msra.mxu0 0.0
        %849 = vmatpush.msra.mxu0 0.0
        %850 = vmatpush.msra.mxu0 0.0
        %851 = vmatpush.msra.mxu0 0.0
        %852 = vmatpush.msra.mxu0 0.0
        %853 = vmatpush.msra.mxu0 0.0
        %854 = vmatpush.msra.mxu0 0.0
        %855 = vmatpush.msra.mxu0 0.0
        %856 = vmatpush.msra.mxu0 0.0
        %857 = vmatpush.msra.mxu0 %v836
        %858 = vmatmul.f32.gmra.mxu0 %v834
        %v859 = vpop.f32.mrf.mxu0
        %v860 = vadd.f32 0.0, %v859
        %861 = vdwg.mxu0
        %862 = vmatpush.msra.mxu0 0.0
        %863 = vmatpush.msra.mxu0 0.0
        %864 = vmatpush.msra.mxu0 0.0
        %865 = vmatpush.msra.mxu0 0.0
        %866 = vmatpush.msra.mxu0 0.0
        %867 = vmatpush.msra.mxu0 0.0
        %868 = vmatpush.msra.mxu0 0.0
        %869 = vmatpush.msra.mxu0 0.0
        %870 = vmatpush.msra.mxu0 0.0
        %871 = vmatpush.msra.mxu0 0.0
        %872 = vmatpush.msra.mxu0 0.0
        %873 = vmatpush.msra.mxu0 0.0
        %874 = vmatpush.msra.mxu0 0.0
        %875 = vmatpush.msra.mxu0 0.0
        %876 = vmatpush.msra.mxu0 0.0
        %877 = vmatpush.msra.mxu0 %v838
        %878 = vmatmul.f32.gmra.mxu0 %v834
        %v879 = vpop.f32.mrf.mxu0
        %v880 = vadd.f32 0.0, %v879
        %881 = vdwg.mxu0
        %882 = vmatpush.msra.mxu0 0.0
        %883 = vmatpush.msra.mxu0 0.0
        %884 = vmatpush.msra.mxu0 0.0
        %885 = vmatpush.msra.mxu0 0.0
        %886 = vmatpush.msra.mxu0 0.0
        %887 = vmatpush.msra.mxu0 0.0
        %888 = vmatpush.msra.mxu0 0.0
        %889 = vmatpush.msra.mxu0 0.0
        %890 = vmatpush.msra.mxu0 0.0
        %891 = vmatpush.msra.mxu0 0.0
        %892 = vmatpush.msra.mxu0 0.0
        %893 = vmatpush.msra.mxu0 0.0
        %894 = vmatpush.msra.mxu0 0.0
        %895 = vmatpush.msra.mxu0 0.0
        %896 = vmatpush.msra.mxu0 0.0
        %897 = vmatpush.msra.mxu0 %v840
        %898 = vmatmul.f32.gmra.mxu0 %v834
        %v899 = vpop.f32.mrf.mxu0
        %v900 = vadd.f32 0.0, %v899
        %901 = vdwg.mxu0
        %v902 = vadd.f32 %v805, %v860
        %v903 = vadd.f32 %v806, %v880
        %v904 = vadd.f32 %v807, %v900
        %v905 = vld [vmem:[%s234] sm:$0xff]
        %v906 = vld [vmem:[%s234 + $0x8] sm:$0xff]
        %s907 = scalar_lea.vmem %s1, 56
        %v908 = vld [vmem:[%s907] sm:$0xff]
        %911 = vst [vmem:[#allocation1] ss:$2 sm:$0xff] %v905
        %s912 = scalar_lea.vmem [#allocation1], 16
        %913 = vst [vmem:[%s912] ss:$2 sm:$0xff] %v906
        %v914 = vld.sshfl [vmem:[#allocation1] sm:$0xff pattern:$0x75316420]
        %v915 = vld.sshfl [vmem:[#allocation1 + $0x8] sm:$0xff pattern:$0x75316420]
        %v916 = vld.sshfl [vmem:[#allocation1 + $0x10] sm:$0xff pattern:$0x75316420]
        %v917 = vld.sshfl [vmem:[#allocation1 + $0x18] sm:$0xff pattern:$0x75316420]
        %918 = vrot.lane.b32.xlu0 %v914, 91
        %v919 = vpop.permute.xlu0 %918
        %920 = vrot.lane.b32.xlu0 %v915, 91
        %v921 = vpop.permute.xlu0 %920
        %922 = vrot.lane.b32.xlu0 %v916, 91
        %v923 = vpop.permute.xlu0 %922
        %924 = vrot.lane.b32.xlu0 %v917, 91
        %v925 = vpop.permute.xlu0 %924
        %vm926 = vcmask 744448
        %v927 = vsel %vm926, %v919, %v921
        %v928 = vsel %vm926, %v921, %v923
        %v929 = vsel %vm926, %v923, %v925
        %v931 = vsel %vm272, %v908, 0
        %v933 = vsel %vm276, %v927, 0
        %v935 = vsel %vm276, %v928, 0
        %v937 = vsel %vm276, %v929, 0
        %939 = vmatpush.msra.mxu0 0.0
        %940 = vmatpush.msra.mxu0 0.0
        %941 = vmatpush.msra.mxu0 0.0
        %942 = vmatpush.msra.mxu0 0.0
        %943 = vmatpush.msra.mxu0 0.0
        %944 = vmatpush.msra.mxu0 0.0
        %945 = vmatpush.msra.mxu0 0.0
        %946 = vmatpush.msra.mxu0 0.0
        %947 = vmatpush.msra.mxu0 0.0
        %948 = vmatpush.msra.mxu0 0.0
        %949 = vmatpush.msra.mxu0 0.0
        %950 = vmatpush.msra.mxu0 0.0
        %951 = vmatpush.msra.mxu0 0.0
        %952 = vmatpush.msra.mxu0 0.0
        %953 = vmatpush.msra.mxu0 0.0
        %954 = vmatpush.msra.mxu0 %v933
        %955 = vmatmul.f32.gmra.mxu0 %v931
        %v956 = vpop.f32.mrf.mxu0
        %v957 = vadd.f32 0.0, %v956
        %958 = vdwg.mxu0
        %959 = vmatpush.msra.mxu0 0.0
        %960 = vmatpush.msra.mxu0 0.0
        %961 = vmatpush.msra.mxu0 0.0
        %962 = vmatpush.msra.mxu0 0.0
        %963 = vmatpush.msra.mxu0 0.0
        %964 = vmatpush.msra.mxu0 0.0
        %965 = vmatpush.msra.mxu0 0.0
        %966 = vmatpush.msra.mxu0 0.0
        %967 = vmatpush.msra.mxu0 0.0
        %968 = vmatpush.msra.mxu0 0.0
        %969 = vmatpush.msra.mxu0 0.0
        %970 = vmatpush.msra.mxu0 0.0
        %971 = vmatpush.msra.mxu0 0.0
        %972 = vmatpush.msra.mxu0 0.0
        %973 = vmatpush.msra.mxu0 0.0
        %974 = vmatpush.msra.mxu0 %v935
        %975 = vmatmul.f32.gmra.mxu0 %v931
        %v976 = vpop.f32.mrf.mxu0
        %v977 = vadd.f32 0.0, %v976
        %978 = vdwg.mxu0
        %979 = vmatpush.msra.mxu0 0.0
        %980 = vmatpush.msra.mxu0 0.0
        %981 = vmatpush.msra.mxu0 0.0
        %982 = vmatpush.msra.mxu0 0.0
        %983 = vmatpush.msra.mxu0 0.0
        %984 = vmatpush.msra.mxu0 0.0
        %985 = vmatpush.msra.mxu0 0.0
        %986 = vmatpush.msra.mxu0 0.0
        %987 = vmatpush.msra.mxu0 0.0
        %988 = vmatpush.msra.mxu0 0.0
        %989 = vmatpush.msra.mxu0 0.0
        %990 = vmatpush.msra.mxu0 0.0
        %991 = vmatpush.msra.mxu0 0.0
        %992 = vmatpush.msra.mxu0 0.0
        %993 = vmatpush.msra.mxu0 0.0
        %994 = vmatpush.msra.mxu0 %v937
        %995 = vmatmul.f32.gmra.mxu0 %v931
        %v996 = vpop.f32.mrf.mxu0
        %v997 = vadd.f32 0.0, %v996
        %998 = vdwg.mxu0
        %v999 = vadd.f32 %v902, %v957
        %v1000 = vadd.f32 %v903, %v977
        %v1001 = vadd.f32 %v904, %v997
        %v1002 = vld [vmem:[%s234] sm:$0xff]
        %v1003 = vld [vmem:[%s234 + $0x8] sm:$0xff]
        %s1004 = scalar_lea.vmem %s1, 64
        %v1005 = vld [vmem:[%s1004] sm:$0xff]
        %1008 = vst [vmem:[#allocation1] ss:$2 sm:$0xff] %v1002
        %s1009 = scalar_lea.vmem [#allocation1], 16
        %1010 = vst [vmem:[%s1009] ss:$2 sm:$0xff] %v1003
        %v1011 = vld.sshfl [vmem:[#allocation1] sm:$0xff pattern:$0x75316420]
        %v1012 = vld.sshfl [vmem:[#allocation1 + $0x8] sm:$0xff pattern:$0x75316420]
        %v1013 = vld.sshfl [vmem:[#allocation1 + $0x10] sm:$0xff pattern:$0x75316420]
        %v1014 = vld.sshfl [vmem:[#allocation1 + $0x18] sm:$0xff pattern:$0x75316420]
        %1015 = vrot.lane.b32.xlu0 %v1011, 90
        %v1016 = vpop.permute.xlu0 %1015
        %1017 = vrot.lane.b32.xlu0 %v1012, 90
        %v1018 = vpop.permute.xlu0 %1017
        %1019 = vrot.lane.b32.xlu0 %v1013, 90
        %v1020 = vpop.permute.xlu0 %1019
        %1021 = vrot.lane.b32.xlu0 %v1014, 90
        %v1022 = vpop.permute.xlu0 %1021
        %vm1023 = vcmask 736256
        %v1024 = vsel %vm1023, %v1016, %v1018
        %v1025 = vsel %vm1023, %v1018, %v1020
        %v1026 = vsel %vm1023, %v1020, %v1022
        %v1028 = vsel %vm272, %v1005, 0
        %v1030 = vsel %vm276, %v1024, 0
        %v1032 = vsel %vm276, %v1025, 0
        %v1034 = vsel %vm276, %v1026, 0
        %1036 = vmatpush.msra.mxu0 0.0
        %1037 = vmatpush.msra.mxu0 0.0
        %1038 = vmatpush.msra.mxu0 0.0
        %1039 = vmatpush.msra.mxu0 0.0
        %1040 = vmatpush.msra.mxu0 0.0
        %1041 = vmatpush.msra.mxu0 0.0
        %1042 = vmatpush.msra.mxu0 0.0
        %1043 = vmatpush.msra.mxu0 0.0
        %1044 = vmatpush.msra.mxu0 0.0
        %1045 = vmatpush.msra.mxu0 0.0
        %1046 = vmatpush.msra.mxu0 0.0
        %1047 = vmatpush.msra.mxu0 0.0
        %1048 = vmatpush.msra.mxu0 0.0
        %1049 = vmatpush.msra.mxu0 0.0
        %1050 = vmatpush.msra.mxu0 0.0
        %1051 = vmatpush.msra.mxu0 %v1030
        %1052 = vmatmul.f32.gmra.mxu0 %v1028
        %v1053 = vpop.f32.mrf.mxu0
        %v1054 = vadd.f32 0.0, %v1053
        %1055 = vdwg.mxu0
        %1056 = vmatpush.msra.mxu0 0.0
        %1057 = vmatpush.msra.mxu0 0.0
        %1058 = vmatpush.msra.mxu0 0.0
        %1059 = vmatpush.msra.mxu0 0.0
        %1060 = vmatpush.msra.mxu0 0.0
        %1061 = vmatpush.msra.mxu0 0.0
        %1062 = vmatpush.msra.mxu0 0.0
        %1063 = vmatpush.msra.mxu0 0.0
        %1064 = vmatpush.msra.mxu0 0.0
        %1065 = vmatpush.msra.mxu0 0.0
        %1066 = vmatpush.msra.mxu0 0.0
        %1067 = vmatpush.msra.mxu0 0.0
        %1068 = vmatpush.msra.mxu0 0.0
        %1069 = vmatpush.msra.mxu0 0.0
        %1070 = vmatpush.msra.mxu0 0.0
        %1071 = vmatpush.msra.mxu0 %v1032
        %1072 = vmatmul.f32.gmra.mxu0 %v1028
        %v1073 = vpop.f32.mrf.mxu0
        %v1074 = vadd.f32 0.0, %v1073
        %1075 = vdwg.mxu0
        %1076 = vmatpush.msra.mxu0 0.0
        %1077 = vmatpush.msra.mxu0 0.0
        %1078 = vmatpush.msra.mxu0 0.0
        %1079 = vmatpush.msra.mxu0 0.0
        %1080 = vmatpush.msra.mxu0 0.0
        %1081 = vmatpush.msra.mxu0 0.0
        %1082 = vmatpush.msra.mxu0 0.0
        %1083 = vmatpush.msra.mxu0 0.0
        %1084 = vmatpush.msra.mxu0 0.0
        %1085 = vmatpush.msra.mxu0 0.0
        %1086 = vmatpush.msra.mxu0 0.0
        %1087 = vmatpush.msra.mxu0 0.0
        %1088 = vmatpush.msra.mxu0 0.0
        %1089 = vmatpush.msra.mxu0 0.0
        %1090 = vmatpush.msra.mxu0 0.0
        %1091 = vmatpush.msra.mxu0 %v1034
        %1092 = vmatmul.f32.gmra.mxu0 %v1028
        %v1093 = vpop.f32.mrf.mxu0
        %v1094 = vadd.f32 0.0, %v1093
        %1095 = vdwg.mxu0
        %v1096 = vadd.f32 %v999, %v1054
        %v1097 = vadd.f32 %v1000, %v1074
        %v1098 = vadd.f32 %v1001, %v1094
        %v1099 = vld [vmem:[%s2] sm:$0x7]
        // Predicated region
        $region45: #{tpu_custom_call.1} parent=39 // pred_check
          %p1100 = pneg %p235
        $region46: #{tpu_custom_call.1} parent=39 // pred_check_branch
          %1102 = sbr.rel (%p1100) target = $region48
        $region47: #{tpu_custom_call.1} parent=39 // pred_region
          %v1104 = vperm.slane %v1099, 0
          %v1105 = vperm.slane %v1099, 1
          %v1106 = vperm.slane %v1099, 2
          %v1110 = vmul.f32 %v1096, %v1104
          %v1111 = vmul.f32 %v1097, %v1105
          %v1112 = vmul.f32 %v1098, %v1106
          %v1113 = vld [vmem:[#allocation2] sm:$0xff]
          %v1114 = vadd.f32 %v1110, %v1111
          %v1115 = vadd.f32 %v1114, %v1112
          %1116 = vadd.xlane.f32.xlu0 %v1115
          %v1117 = vpop.xlane.xlu0 %1116
          %v1118 = vadd.f32 %v1113, %v1117
          %vm1119 = vcmask 7168
          %1120 = vst.msk [vmem:[#allocation2] sm:$0xff] %vm1119, %v1118
          %v1121 = vld [vmem:[#allocation3] sm:$0xff]
          %v1122 = vmul.f32 %v1110, %v1096
          %v1123 = vmul.f32 %v1111, %v1097
          %v1124 = vmul.f32 %v1112, %v1098
          %v1125 = vadd.f32 %v1122, %v1123
          %v1126 = vadd.f32 %v1125, %v1124
          %1127 = vadd.xlane.f32.xlu0 %v1126
          %v1128 = vpop.xlane.xlu0 %1127
          %v1129 = vadd.f32 %v1121, %v1128
          %1130 = vst.msk [vmem:[#allocation3] sm:$0xff] %vm1119, %v1129
        $region48: #{tpu_custom_call.1} parent=39 // pred_fallthru
          _
        %p1131 = scmp.eq.s32.totalorder %s23, 1
        // Predicated region
        $region49: #{tpu_custom_call.1} parent=39 // pred_check
          %p1132 = pneg %p1131
        $region50: #{tpu_custom_call.1} parent=39 // pred_check_branch
          %1134 = sbr.rel (%p1132) target = $region52
        $region51: #{tpu_custom_call.1} parent=39 // pred_region
          %v1135 = vld [vmem:[#allocation2] sm:$0xff]
          %v1136 = vmul.f32 %v1135, 0.001953125
          %v1137 = vld [vmem:[#allocation3] sm:$0xff]
          %v1138 = vmul.f32 %v1137, 0.001953125
          %v1139 = vmul.f32 %v1136, %v1136
          %v1140 = vsub.f32 %v1138, %v1139
          %v1141 = vadd.f32 %v1140, 1e-05
          %v1142 = vrsqrt.pop %v1141
          %v1143 = vmul.f32 %v1142, %v1141
          %v1144 = vmul.f32 %v1143, %v1142
          %v1145 = vmul.f32 0.5, %v1144
          %v1146 = vsub.f32 1.5, %v1145
          %v1147 = vmul.f32 %v1142, %v1146
          %vm1148 = vweird.f32 %v1141
          %vm1149 = vweird.f32 %v1142
          %vm1150 = vmor %vm1148, %vm1149
          %v1151 = vsel %vm1150, %v1142, %v1147
          %v1152 = vld [vmem:[%s3] sm:$0xff]
          %v1153 = vmul.f32 %v1151, %v1152
          %v1154 = vld [vmem:[%s4] sm:$0xff]
          %v1155 = vmul.f32 %v1136, %v1153
          %v1156 = vsub.f32 %v1154, %v1155
          %1158 = vset.pattern.permute.xlu0 0
          %1159 = vperm.xlu0 %1158, %v1153
          %v1160 = vpop.permute.xlu0 %1159
          %v1162 = vmul.f32 %v1096, %v1160
          %v1163 = vmul.f32 %v1097, %v1160
          %v1164 = vmul.f32 %v1098, %v1160
          %1166 = vset.pattern.permute.xlu0 0
          %1167 = vperm.xlu0 %1166, %v1156
          %v1168 = vpop.permute.xlu0 %1167
          %v1170 = vadd.f32 %v1162, %v1168
          %v1171 = vadd.f32 %v1163, %v1168
          %v1172 = vadd.f32 %v1164, %v1168
          %v1173 = vmax.f32 %v1170, 0.0
          %v1174 = vmax.f32 %v1171, 0.0
          %v1175 = vmax.f32 %v1172, 0.0
          %1176 = vst [vmem:[%s229] sm:$0xff] %v1173
          %1177 = vst [vmem:[%s229 + $0x8] sm:$0xff] %v1174
          %1178 = vst [vmem:[%s229 + $0x10] sm:$0xff] %v1175
        $region52: #{tpu_custom_call.1} parent=39 // pred_fallthru
          _
        %s1179 = sand.u32 %s149, 1
        %s1180 = scalar_lea.sflag [#allocation5], %s1179
        %s1181 = sand.u32 %s149, 1
        %s1182 = smul.addr %s1181, 24
        %s1183 = scalar_lea.vmem [#allocation4], %s1182
        // Predicated region
        $region53: #{tpu_custom_call.1} parent=39 // pred_check
          %p1184 = pneg %p159
        $region54: #{tpu_custom_call.1} parent=39 // pred_check_branch
          %1186 = sbr.rel (%p1184) target = $region56
        $region55: #{tpu_custom_call.1} parent=39 // pred_region
          %1188 = vsyncadd %s1180, 0
          %s1189 = smul.addr %s24, 3
          %s1190 = smul.addr %s1189, 8
          %s1191 = scalar_lea.hbm %s5, %s1190
          %s1193 = sshll.u32 %s1183, 4
          %s1194 = int_to_ptr.vmem [resolvable:$true] %s1193
          %s1195 = sshll.u32 %s1191, 4
          %s1196 = int_to_ptr.hbm [resolvable:$true] %s1195
          %1198 = dma.vmem_to_hbm [thread:$0]  %s1194, 384, %s1196, %s1180
        $region56: #{tpu_custom_call.1} parent=39 // pred_fallthru
          _
      $region40: #{tpu_custom_call.1} parent=5 // pred_fallthru
        _
      %p1199 = scmp.le.s32.totalorder 2, %s14
      // Predicated region
      $region57: #{tpu_custom_call.1} parent=5 // pred_check
        %p1200 = pneg %p1199
      $region58: #{tpu_custom_call.1} parent=5 // pred_check_branch
        %1202 = sbr.rel (%p1200) target = $region60
      $region59: #{tpu_custom_call.1} parent=5 // pred_region
        %s1203 = ssub.s32 %s14, 2
        // Predicated region
        $region61: #{tpu_custom_call.1} parent=59 // pred_check
          %p1204 = pneg %p165
        $region62: #{tpu_custom_call.1} parent=59 // pred_check_branch
          %1206 = sbr.rel (%p1204) target = $region64
        $region63: #{tpu_custom_call.1} parent=59 // pred_region
          %s1207 = sand.u32 %s150, 1
          %s1208 = scalar_lea.sflag [#allocation5], %s1207
          %s1209 = sand.u32 %s150, 1
          %s1210 = smul.addr %s1209, 24
          %s1211 = scalar_lea.vmem [#allocation4], %s1210
          %1213 = dma.done %s1208, 384
        $region64: #{tpu_custom_call.1} parent=59 // pred_fallthru
          _
      $region60: #{tpu_custom_call.1} parent=5 // pred_fallthru
        _
    $region6: #{tpu_custom_call.1} parent=1 // loop_footer
      %s18 = sadd.s32 1, %s14
    $region7: #{tpu_custom_call.1} parent=1 // loop_footer_branch
      %13 = sbr.rel target = $region3
    $region8: #{tpu_custom_call.1} parent=1 // loop_exit
      _
    %1214 = vsyncpa [#allocation5], 1
    %s1215 = scalar_lea.sflag [#allocation5], 1
    %1216 = vsyncpa %s1215, 1

</llo_original>
